<compile_context>
chip_gen: v5e
topology: v5e:2x2
jax: 0.10.0
libtpu: 0.0.40
codegen_flags: <defaults>
</compile_context>

<pallas_src>
import jax
import jax.numpy as jnp
from jax import lax
from jax.experimental import pallas as pl
from jax.experimental.pallas import tpu as pltpu


def _critic_kernel(x2d_ref, action_ref,
                   wih_ref, whh_ref, bg_ref,
                   w1h_ref, w1a_ref, b1_ref,
                   w2_ref, b2_ref,
                   q_ref, h_ref, c_ref,
                   gx_ref):
    """Whole Critic forward in one kernel.

    x2d_ref   : (T*B, D)   time-major flattened input sequence
    action_ref: (B, A)
    wih_ref   : (D, 4H)    input->gates weights (transposed)
    whh_ref   : (H, 4H)    hidden->gates weights (transposed)
    bg_ref    : (1, 4H)    b_ih + b_hh
    w1h_ref   : (H, F), w1a_ref: (A, F), b1_ref: (1, F)
    w2_ref    : (F, 1), b2_ref: (1, 1)
    q_ref     : (B, 1)     output Q value
    h_ref     : (B, H)     final hidden state
    c_ref     : (B, H)     final cell state
    gx_ref    : (T*B, 4H)  VMEM scratch holding the hoisted input projection
    """
    B, H = h_ref.shape
    T = x2d_ref.shape[0] // B

    # ---- hoisted input projection (+ folded gate bias): ONE big MXU matmul ----
    gx_ref[...] = (
        jnp.dot(x2d_ref[...], wih_ref[...], preferred_element_type=jnp.float32)
        + bg_ref[...]
    )                                                   # (T*B, 4H), rows time-major

    whh = whh_ref[...]                                  # hoist weight load out of loop

    def step(t, carry):
        h, c = carry
        xg = gx_ref[pl.ds(t * B, B), :]                 # (B, 4H) precomputed x-part
        gates = xg + jnp.dot(h, whh, preferred_element_type=jnp.float32)
        # PyTorch LSTM gate order: i, f, g, o (lane-aligned slices when H % 128 == 0)
        i_g = jax.nn.sigmoid(gates[:, 0 * H:1 * H])
        f_g = jax.nn.sigmoid(gates[:, 1 * H:2 * H])
        g_g = jnp.tanh(gates[:, 2 * H:3 * H])
        o_g = jax.nn.sigmoid(gates[:, 3 * H:4 * H])
        c_new = f_g * c + i_g * g_g
        h_new = o_g * jnp.tanh(c_new)
        return h_new, c_new

    # hidden=None in PyTorch -> zero initial (h, c); carried in vregs, not refs.
    h0 = jnp.zeros((B, H), jnp.float32)
    c0 = jnp.zeros((B, H), jnp.float32)
    h_fin, c_fin = lax.fori_loop(0, T, step, (h0, c0), unroll=True)

    h_ref[...] = h_fin
    c_ref[...] = c_fin

    # fc: Linear(H + A -> F) as split matmul (avoids explicit concat), ReLU, Linear(F -> 1).
    hidden1 = jnp.maximum(
        jnp.dot(h_fin, w1h_ref[...], preferred_element_type=jnp.float32)
        + jnp.dot(action_ref[...], w1a_ref[...], preferred_element_type=jnp.float32)
        + b1_ref[...],
        0.0,
    )
    q_ref[...] = (
        jnp.dot(hidden1, w2_ref[...], preferred_element_type=jnp.float32) + b2_ref[...]
    )


def init_critic_params(key, state_dim, action_dim, lstm_hidden=128, fc_hidden=64):
    """Deterministic synthetic parameters (PyTorch-equivalent shapes, pre-transposed)."""
    ks = jax.random.split(key, 10)
    H, F, D, A = lstm_hidden, fc_hidden, state_dim, action_dim
    scale = 0.1
    params = {
        "w_ih_t": scale * jax.random.normal(ks[0], (D, 4 * H), jnp.float32),
        "w_hh_t": scale * jax.random.normal(ks[1], (H, 4 * H), jnp.float32),
        "b_gates": scale * jax.random.normal(ks[2], (1, 4 * H), jnp.float32),   # b_ih + b_hh
        "w1h_t": scale * jax.random.normal(ks[3], (H, F), jnp.float32),
        "w1a_t": scale * jax.random.normal(ks[4], (A, F), jnp.float32),
        "b1": scale * jax.random.normal(ks[5], (1, F), jnp.float32),
        "w2_t": scale * jax.random.normal(ks[6], (F, 1), jnp.float32),
        "b2": scale * jax.random.normal(ks[7], (1, 1), jnp.float32),
    }
    return params


@jax.jit
def critic_forward(params, state, action):
    """Matches Critic.forward(state, action, hidden=None)."""
    if state.ndim == 2:
        state = state[:, None, :]            # unsqueeze(1)
    B, T, D = state.shape
    action = action.reshape(B, -1)           # action.reshape(len(action), -1)
    H = params["w_hh_t"].shape[0]

    # Time-major, flattened to 2D so the kernel does one input-projection matmul
    # and indexes each timestep as a contiguous sublane slice.
    # TODO(synk): for production-scale T*B*D, stream T-chunks through a grid
    # (h/c as resident scratch, state blocked on T) and add a batch-parallel grid
    # axis for v7x's two TensorCores instead of this full-array VMEM residency.
    x2d = jnp.transpose(state, (1, 0, 2)).reshape(T * B, D)

    vmem = pl.BlockSpec(memory_space=pltpu.MemorySpace.VMEM)
    q, h_n, c_n = pl.pallas_call(
        _critic_kernel,
        out_shape=(
            jax.ShapeDtypeStruct((B, 1), jnp.float32),
            jax.ShapeDtypeStruct((B, H), jnp.float32),
            jax.ShapeDtypeStruct((B, H), jnp.float32),
        ),
        in_specs=[vmem] * 10,
        out_specs=(vmem, vmem, vmem),
        scratch_shapes=[pltpu.VMEM((T * B, 4 * H), jnp.float32)],
    )(
        x2d, action,
        params["w_ih_t"], params["w_hh_t"], params["b_gates"],
        params["w1h_t"], params["w1a_t"], params["b1"],
        params["w2_t"], params["b2"],
    )
    # PyTorch returns hidden as (h_n, c_n) each of shape (num_layers=1, B, H)
    return q, (h_n[None], c_n[None])


def _critic_forward_ref(params, state, action):
    """Pure-JAX reference for validation."""
    if state.ndim == 2:
        state = state[:, None, :]
    B, T, D = state.shape
    action = action.reshape(B, -1)
    H = params["w_hh_t"].shape[0]
    h = jnp.zeros((B, H), jnp.float32)
    c = jnp.zeros((B, H), jnp.float32)
    for t in range(T):
        gates = state[:, t, :] @ params["w_ih_t"] + h @ params["w_hh_t"] + params["b_gates"]
        i = jax.nn.sigmoid(gates[:, 0 * H:1 * H])
        f = jax.nn.sigmoid(gates[:, 1 * H:2 * H])
        g = jnp.tanh(gates[:, 2 * H:3 * H])
        o = jax.nn.sigmoid(gates[:, 3 * H:4 * H])
        c = f * c + i * g
        h = o * jnp.tanh(c)
    hid = jnp.maximum(h @ params["w1h_t"] + action @ params["w1a_t"] + params["b1"], 0.0)
    q = hid @ params["w2_t"] + params["b2"]
    return q, (h[None], c[None])


if __name__ == "__main__":
    # small shapes: batch=2, seq=8, state_dim=16, action_dim=8,
    # module-default hidden dims: lstm_hidden=128 (lane-aligned gates), fc_hidden=64
    B, T, D, A = 2, 8, 16, 8
    H, F = 128, 64

    key = jax.random.PRNGKey(0)
    k_params, k_state, k_action = jax.random.split(key, 3)
    params = init_critic_params(k_params, D, A, lstm_hidden=H, fc_hidden=F)
    state = jax.random.normal(k_state, (B, T, D), jnp.float32)
    action = jax.random.normal(k_action, (B, A), jnp.float32)

    q, (h_n, c_n) = critic_forward(params, state, action)
    jax.block_until_ready((q, h_n, c_n))

    q_ref, (h_ref, c_ref) = _critic_forward_ref(params, state, action)
    assert q.shape == (B, 1) and h_n.shape == (1, B, H) and c_n.shape == (1, B, H)
    assert jnp.allclose(q, q_ref, atol=1e-4, rtol=1e-4)
    assert jnp.allclose(h_n, h_ref, atol=1e-4, rtol=1e-4)
    assert jnp.allclose(c_n, c_ref, atol=1e-4, rtol=1e-4)

    print("KERNEL_OK")
</pallas_src>

<mosaic_0001>
module attributes {stable_mosaic.version = 11 : i64} {
  func.func @_critic_kernel(%arg0: memref<16x16xf32, #tpu.memory_space<vmem>>, %arg1: memref<2x8xf32, #tpu.memory_space<vmem>>, %arg2: memref<16x512xf32, #tpu.memory_space<vmem>>, %arg3: memref<128x512xf32, #tpu.memory_space<vmem>>, %arg4: memref<1x512xf32, #tpu.memory_space<vmem>>, %arg5: memref<128x64xf32, #tpu.memory_space<vmem>>, %arg6: memref<8x64xf32, #tpu.memory_space<vmem>>, %arg7: memref<1x64xf32, #tpu.memory_space<vmem>>, %arg8: memref<64x1xf32, #tpu.memory_space<vmem>>, %arg9: memref<1x1xf32, #tpu.memory_space<vmem>>, %arg10: memref<2x1xf32, #tpu.memory_space<vmem>>, %arg11: memref<2x128xf32, #tpu.memory_space<vmem>>, %arg12: memref<2x128xf32, #tpu.memory_space<vmem>>, %arg13: memref<16x512xf32, #tpu.memory_space<vmem>>) attributes {dimension_semantics = [], scalar_prefetch = 0 : i64, scratch_operands = 1 : i64, tpu.core_type = #tpu.core_type<tc>} {
    %c0 = arith.constant 0 : index
    %c0_0 = arith.constant 0 : index
    %0 = vector.load %arg0[%c0, %c0_0] : memref<16x16xf32, #tpu.memory_space<vmem>>, vector<16x16xf32>
    %c0_1 = arith.constant 0 : index
    %c0_2 = arith.constant 0 : index
    %1 = vector.load %arg2[%c0_1, %c0_2] : memref<16x512xf32, #tpu.memory_space<vmem>>, vector<16x512xf32>
    %cst = arith.constant dense<0.000000e+00> : vector<16x512xf32>
    %2 = tpu.matmul %0, %1, %cst {dimension_numbers = #tpu.dot_dimension_numbers<[1], [0], [0], [1], [0, 0, 1, 1], [], []>} : vector<16x16xf32>, vector<16x512xf32>, vector<16x512xf32> -> vector<16x512xf32>
    %c0_3 = arith.constant 0 : index
    %c0_4 = arith.constant 0 : index
    %3 = vector.load %arg4[%c0_3, %c0_4] : memref<1x512xf32, #tpu.memory_space<vmem>>, vector<1x512xf32>
    %4 = vector.broadcast %3 : vector<1x512xf32> to vector<16x512xf32>
    %5 = arith.addf %2, %4 : vector<16x512xf32>
    %c0_5 = arith.constant 0 : index
    %c0_6 = arith.constant 0 : index
    %6 = vector.load %arg13[%c0_5, %c0_6] : memref<16x512xf32, #tpu.memory_space<vmem>>, vector<16x512xf32>
    tpu.vector_store %arg13[%c0_5, %c0_6], %5 {strides = array<i32>} : memref<16x512xf32, #tpu.memory_space<vmem>>, vector<16x512xf32>,
    %c0_7 = arith.constant 0 : index
    %c0_8 = arith.constant 0 : index
    %7 = vector.load %arg3[%c0_7, %c0_8] : memref<128x512xf32, #tpu.memory_space<vmem>>, vector<128x512xf32>
    %cst_9 = arith.constant 0.000000e+00 : f32
    %8 = vector.broadcast %cst_9 : f32 to vector<2x128xf32>
    %cst_10 = arith.constant 0.000000e+00 : f32
    %9 = vector.broadcast %cst_10 : f32 to vector<2x128xf32>
    %c0_i32 = arith.constant 0 : i32
    %c2_i32 = arith.constant 2 : i32
    %10 = arith.muli %c0_i32, %c2_i32 : i32
    %11 = arith.index_cast %10 : i32 to index
    %c0_11 = arith.constant 0 : index
    %12 = vector.load %arg13[%11, %c0_11] : memref<16x512xf32, #tpu.memory_space<vmem>>, vector<2x512xf32>
    %cst_12 = arith.constant dense<0.000000e+00> : vector<2x512xf32>
    %13 = tpu.matmul %8, %7, %cst_12 {dimension_numbers = #tpu.dot_dimension_numbers<[1], [0], [0], [1], [0, 0, 1, 1], [], []>} : vector<2x128xf32>, vector<128x512xf32>, vector<2x512xf32> -> vector<2x512xf32>
    %14 = arith.addf %12, %13 : vector<2x512xf32>
    %15 = vector.extract_strided_slice %14 {offsets = [0, 0], sizes = [2, 128], strides = [1, 1]} : vector<2x512xf32> to vector<2x128xf32>
    %16 = arith.negf %15 : vector<2x128xf32>
    %17 = math.exp %16 : vector<2x128xf32>
    %cst_13 = arith.constant 1.000000e+00 : f32
    %18 = vector.broadcast %cst_13 : f32 to vector<2x128xf32>
    %19 = arith.addf %18, %17 : vector<2x128xf32>
    %20 = arith.divf %18, %19 : vector<2x128xf32>
    %21 = vector.extract_strided_slice %14 {offsets = [0, 128], sizes = [2, 128], strides = [1, 1]} : vector<2x512xf32> to vector<2x128xf32>
    %22 = arith.negf %21 : vector<2x128xf32>
    %23 = math.exp %22 : vector<2x128xf32>
    %cst_14 = arith.constant 1.000000e+00 : f32
    %24 = vector.broadcast %cst_14 : f32 to vector<2x128xf32>
    %25 = arith.addf %24, %23 : vector<2x128xf32>
    %26 = arith.divf %24, %25 : vector<2x128xf32>
    %27 = vector.extract_strided_slice %14 {offsets = [0, 256], sizes = [2, 128], strides = [1, 1]} : vector<2x512xf32> to vector<2x128xf32>
    %28 = math.tanh %27 : vector<2x128xf32>
    %29 = vector.extract_strided_slice %14 {offsets = [0, 384], sizes = [2, 128], strides = [1, 1]} : vector<2x512xf32> to vector<2x128xf32>
    %30 = arith.negf %29 : vector<2x128xf32>
    %31 = math.exp %30 : vector<2x128xf32>
    %cst_15 = arith.constant 1.000000e+00 : f32
    %32 = vector.broadcast %cst_15 : f32 to vector<2x128xf32>
    %33 = arith.addf %32, %31 : vector<2x128xf32>
    %34 = arith.divf %32, %33 : vector<2x128xf32>
    %35 = arith.mulf %26, %9 : vector<2x128xf32>
    %36 = arith.mulf %20, %28 : vector<2x128xf32>
    %37 = arith.addf %35, %36 : vector<2x128xf32>
    %38 = math.tanh %37 : vector<2x128xf32>
    %39 = arith.mulf %34, %38 : vector<2x128xf32>
    %c1_i32 = arith.constant 1 : i32
    %c2_i32_16 = arith.constant 2 : i32
    %40 = arith.muli %c1_i32, %c2_i32_16 : i32
    %41 = arith.index_cast %40 : i32 to index
    %c0_17 = arith.constant 0 : index
    %42 = vector.load %arg13[%41, %c0_17] : memref<16x512xf32, #tpu.memory_space<vmem>>, vector<2x512xf32>
    %cst_18 = arith.constant dense<0.000000e+00> : vector<2x512xf32>
    %43 = tpu.matmul %39, %7, %cst_18 {dimension_numbers = #tpu.dot_dimension_numbers<[1], [0], [0], [1], [0, 0, 1, 1], [], []>} : vector<2x128xf32>, vector<128x512xf32>, vector<2x512xf32> -> vector<2x512xf32>
    %44 = arith.addf %42, %43 : vector<2x512xf32>
    %45 = vector.extract_strided_slice %44 {offsets = [0, 0], sizes = [2, 128], strides = [1, 1]} : vector<2x512xf32> to vector<2x128xf32>
    %46 = arith.negf %45 : vector<2x128xf32>
    %47 = math.exp %46 : vector<2x128xf32>
    %cst_19 = arith.constant 1.000000e+00 : f32
    %48 = vector.broadcast %cst_19 : f32 to vector<2x128xf32>
    %49 = arith.addf %48, %47 : vector<2x128xf32>
    %50 = arith.divf %48, %49 : vector<2x128xf32>
    %51 = vector.extract_strided_slice %44 {offsets = [0, 128], sizes = [2, 128], strides = [1, 1]} : vector<2x512xf32> to vector<2x128xf32>
    %52 = arith.negf %51 : vector<2x128xf32>
    %53 = math.exp %52 : vector<2x128xf32>
    %cst_20 = arith.constant 1.000000e+00 : f32
    %54 = vector.broadcast %cst_20 : f32 to vector<2x128xf32>
    %55 = arith.addf %54, %53 : vector<2x128xf32>
    %56 = arith.divf %54, %55 : vector<2x128xf32>
    %57 = vector.extract_strided_slice %44 {offsets = [0, 256], sizes = [2, 128], strides = [1, 1]} : vector<2x512xf32> to vector<2x128xf32>
    %58 = math.tanh %57 : vector<2x128xf32>
    %59 = vector.extract_strided_slice %44 {offsets = [0, 384], sizes = [2, 128], strides = [1, 1]} : vector<2x512xf32> to vector<2x128xf32>
    %60 = arith.negf %59 : vector<2x128xf32>
    %61 = math.exp %60 : vector<2x128xf32>
    %cst_21 = arith.constant 1.000000e+00 : f32
    %62 = vector.broadcast %cst_21 : f32 to vector<2x128xf32>
    %63 = arith.addf %62, %61 : vector<2x128xf32>
    %64 = arith.divf %62, %63 : vector<2x128xf32>
    %65 = arith.mulf %56, %37 : vector<2x128xf32>
    %66 = arith.mulf %50, %58 : vector<2x128xf32>
    %67 = arith.addf %65, %66 : vector<2x128xf32>
    %68 = math.tanh %67 : vector<2x128xf32>
    %69 = arith.mulf %64, %68 : vector<2x128xf32>
    %c2_i32_22 = arith.constant 2 : i32
    %c2_i32_23 = arith.constant 2 : i32
    %70 = arith.muli %c2_i32_22, %c2_i32_23 : i32
    %71 = arith.index_cast %70 : i32 to index
    %c0_24 = arith.constant 0 : index
    %72 = vector.load %arg13[%71, %c0_24] : memref<16x512xf32, #tpu.memory_space<vmem>>, vector<2x512xf32>
    %cst_25 = arith.constant dense<0.000000e+00> : vector<2x512xf32>
    %73 = tpu.matmul %69, %7, %cst_25 {dimension_numbers = #tpu.dot_dimension_numbers<[1], [0], [0], [1], [0, 0, 1, 1], [], []>} : vector<2x128xf32>, vector<128x512xf32>, vector<2x512xf32> -> vector<2x512xf32>
    %74 = arith.addf %72, %73 : vector<2x512xf32>
    %75 = vector.extract_strided_slice %74 {offsets = [0, 0], sizes = [2, 128], strides = [1, 1]} : vector<2x512xf32> to vector<2x128xf32>
    %76 = arith.negf %75 : vector<2x128xf32>
    %77 = math.exp %76 : vector<2x128xf32>
    %cst_26 = arith.constant 1.000000e+00 : f32
    %78 = vector.broadcast %cst_26 : f32 to vector<2x128xf32>
    %79 = arith.addf %78, %77 : vector<2x128xf32>
    %80 = arith.divf %78, %79 : vector<2x128xf32>
    %81 = vector.extract_strided_slice %74 {offsets = [0, 128], sizes = [2, 128], strides = [1, 1]} : vector<2x512xf32> to vector<2x128xf32>
    %82 = arith.negf %81 : vector<2x128xf32>
    %83 = math.exp %82 : vector<2x128xf32>
    %cst_27 = arith.constant 1.000000e+00 : f32
    %84 = vector.broadcast %cst_27 : f32 to vector<2x128xf32>
    %85 = arith.addf %84, %83 : vector<2x128xf32>
    %86 = arith.divf %84, %85 : vector<2x128xf32>
    %87 = vector.extract_strided_slice %74 {offsets = [0, 256], sizes = [2, 128], strides = [1, 1]} : vector<2x512xf32> to vector<2x128xf32>
    %88 = math.tanh %87 : vector<2x128xf32>
    %89 = vector.extract_strided_slice %74 {offsets = [0, 384], sizes = [2, 128], strides = [1, 1]} : vector<2x512xf32> to vector<2x128xf32>
    %90 = arith.negf %89 : vector<2x128xf32>
    %91 = math.exp %90 : vector<2x128xf32>
    %cst_28 = arith.constant 1.000000e+00 : f32
    %92 = vector.broadcast %cst_28 : f32 to vector<2x128xf32>
    %93 = arith.addf %92, %91 : vector<2x128xf32>
    %94 = arith.divf %92, %93 : vector<2x128xf32>
    %95 = arith.mulf %86, %67 : vector<2x128xf32>
    %96 = arith.mulf %80, %88 : vector<2x128xf32>
    %97 = arith.addf %95, %96 : vector<2x128xf32>
    %98 = math.tanh %97 : vector<2x128xf32>
    %99 = arith.mulf %94, %98 : vector<2x128xf32>
    %c3_i32 = arith.constant 3 : i32
    %c2_i32_29 = arith.constant 2 : i32
    %100 = arith.muli %c3_i32, %c2_i32_29 : i32
    %101 = arith.index_cast %100 : i32 to index
    %c0_30 = arith.constant 0 : index
    %102 = vector.load %arg13[%101, %c0_30] : memref<16x512xf32, #tpu.memory_space<vmem>>, vector<2x512xf32>
    %cst_31 = arith.constant dense<0.000000e+00> : vector<2x512xf32>
    %103 = tpu.matmul %99, %7, %cst_31 {dimension_numbers = #tpu.dot_dimension_numbers<[1], [0], [0], [1], [0, 0, 1, 1], [], []>} : vector<2x128xf32>, vector<128x512xf32>, vector<2x512xf32> -> vector<2x512xf32>
    %104 = arith.addf %102, %103 : vector<2x512xf32>
    %105 = vector.extract_strided_slice %104 {offsets = [0, 0], sizes = [2, 128], strides = [1, 1]} : vector<2x512xf32> to vector<2x128xf32>
    %106 = arith.negf %105 : vector<2x128xf32>
    %107 = math.exp %106 : vector<2x128xf32>
    %cst_32 = arith.constant 1.000000e+00 : f32
    %108 = vector.broadcast %cst_32 : f32 to vector<2x128xf32>
    %109 = arith.addf %108, %107 : vector<2x128xf32>
    %110 = arith.divf %108, %109 : vector<2x128xf32>
    %111 = vector.extract_strided_slice %104 {offsets = [0, 128], sizes = [2, 128], strides = [1, 1]} : vector<2x512xf32> to vector<2x128xf32>
    %112 = arith.negf %111 : vector<2x128xf32>
    %113 = math.exp %112 : vector<2x128xf32>
    %cst_33 = arith.constant 1.000000e+00 : f32
    %114 = vector.broadcast %cst_33 : f32 to vector<2x128xf32>
    %115 = arith.addf %114, %113 : vector<2x128xf32>
    %116 = arith.divf %114, %115 : vector<2x128xf32>
    %117 = vector.extract_strided_slice %104 {offsets = [0, 256], sizes = [2, 128], strides = [1, 1]} : vector<2x512xf32> to vector<2x128xf32>
    %118 = math.tanh %117 : vector<2x128xf32>
    %119 = vector.extract_strided_slice %104 {offsets = [0, 384], sizes = [2, 128], strides = [1, 1]} : vector<2x512xf32> to vector<2x128xf32>
    %120 = arith.negf %119 : vector<2x128xf32>
    %121 = math.exp %120 : vector<2x128xf32>
    %cst_34 = arith.constant 1.000000e+00 : f32
    %122 = vector.broadcast %cst_34 : f32 to vector<2x128xf32>
    %123 = arith.addf %122, %121 : vector<2x128xf32>
    %124 = arith.divf %122, %123 : vector<2x128xf32>
    %125 = arith.mulf %116, %97 : vector<2x128xf32>
    %126 = arith.mulf %110, %118 : vector<2x128xf32>
    %127 = arith.addf %125, %126 : vector<2x128xf32>
    %128 = math.tanh %127 : vector<2x128xf32>
    %129 = arith.mulf %124, %128 : vector<2x128xf32>
    %c4_i32 = arith.constant 4 : i32
    %c2_i32_35 = arith.constant 2 : i32
    %130 = arith.muli %c4_i32, %c2_i32_35 : i32
    %131 = arith.index_cast %130 : i32 to index
    %c0_36 = arith.constant 0 : index
    %132 = vector.load %arg13[%131, %c0_36] : memref<16x512xf32, #tpu.memory_space<vmem>>, vector<2x512xf32>
    %cst_37 = arith.constant dense<0.000000e+00> : vector<2x512xf32>
    %133 = tpu.matmul %129, %7, %cst_37 {dimension_numbers = #tpu.dot_dimension_numbers<[1], [0], [0], [1], [0, 0, 1, 1], [], []>} : vector<2x128xf32>, vector<128x512xf32>, vector<2x512xf32> -> vector<2x512xf32>
    %134 = arith.addf %132, %133 : vector<2x512xf32>
    %135 = vector.extract_strided_slice %134 {offsets = [0, 0], sizes = [2, 128], strides = [1, 1]} : vector<2x512xf32> to vector<2x128xf32>
    %136 = arith.negf %135 : vector<2x128xf32>
    %137 = math.exp %136 : vector<2x128xf32>
    %cst_38 = arith.constant 1.000000e+00 : f32
    %138 = vector.broadcast %cst_38 : f32 to vector<2x128xf32>
    %139 = arith.addf %138, %137 : vector<2x128xf32>
    %140 = arith.divf %138, %139 : vector<2x128xf32>
    %141 = vector.extract_strided_slice %134 {offsets = [0, 128], sizes = [2, 128], strides = [1, 1]} : vector<2x512xf32> to vector<2x128xf32>
    %142 = arith.negf %141 : vector<2x128xf32>
    %143 = math.exp %142 : vector<2x128xf32>
    %cst_39 = arith.constant 1.000000e+00 : f32
    %144 = vector.broadcast %cst_39 : f32 to vector<2x128xf32>
    %145 = arith.addf %144, %143 : vector<2x128xf32>
    %146 = arith.divf %144, %145 : vector<2x128xf32>
    %147 = vector.extract_strided_slice %134 {offsets = [0, 256], sizes = [2, 128], strides = [1, 1]} : vector<2x512xf32> to vector<2x128xf32>
    %148 = math.tanh %147 : vector<2x128xf32>
    %149 = vector.extract_strided_slice %134 {offsets = [0, 384], sizes = [2, 128], strides = [1, 1]} : vector<2x512xf32> to vector<2x128xf32>
    %150 = arith.negf %149 : vector<2x128xf32>
    %151 = math.exp %150 : vector<2x128xf32>
    %cst_40 = arith.constant 1.000000e+00 : f32
    %152 = vector.broadcast %cst_40 : f32 to vector<2x128xf32>
    %153 = arith.addf %152, %151 : vector<2x128xf32>
    %154 = arith.divf %152, %153 : vector<2x128xf32>
    %155 = arith.mulf %146, %127 : vector<2x128xf32>
    %156 = arith.mulf %140, %148 : vector<2x128xf32>
    %157 = arith.addf %155, %156 : vector<2x128xf32>
    %158 = math.tanh %157 : vector<2x128xf32>
    %159 = arith.mulf %154, %158 : vector<2x128xf32>
    %c5_i32 = arith.constant 5 : i32
    %c2_i32_41 = arith.constant 2 : i32
    %160 = arith.muli %c5_i32, %c2_i32_41 : i32
    %161 = arith.index_cast %160 : i32 to index
    %c0_42 = arith.constant 0 : index
    %162 = vector.load %arg13[%161, %c0_42] : memref<16x512xf32, #tpu.memory_space<vmem>>, vector<2x512xf32>
    %cst_43 = arith.constant dense<0.000000e+00> : vector<2x512xf32>
    %163 = tpu.matmul %159, %7, %cst_43 {dimension_numbers = #tpu.dot_dimension_numbers<[1], [0], [0], [1], [0, 0, 1, 1], [], []>} : vector<2x128xf32>, vector<128x512xf32>, vector<2x512xf32> -> vector<2x512xf32>
    %164 = arith.addf %162, %163 : vector<2x512xf32>
    %165 = vector.extract_strided_slice %164 {offsets = [0, 0], sizes = [2, 128], strides = [1, 1]} : vector<2x512xf32> to vector<2x128xf32>
    %166 = arith.negf %165 : vector<2x128xf32>
    %167 = math.exp %166 : vector<2x128xf32>
    %cst_44 = arith.constant 1.000000e+00 : f32
    %168 = vector.broadcast %cst_44 : f32 to vector<2x128xf32>
    %169 = arith.addf %168, %167 : vector<2x128xf32>
    %170 = arith.divf %168, %169 : vector<2x128xf32>
    %171 = vector.extract_strided_slice %164 {offsets = [0, 128], sizes = [2, 128], strides = [1, 1]} : vector<2x512xf32> to vector<2x128xf32>
    %172 = arith.negf %171 : vector<2x128xf32>
    %173 = math.exp %172 : vector<2x128xf32>
    %cst_45 = arith.constant 1.000000e+00 : f32
    %174 = vector.broadcast %cst_45 : f32 to vector<2x128xf32>
    %175 = arith.addf %174, %173 : vector<2x128xf32>
    %176 = arith.divf %174, %175 : vector<2x128xf32>
    %177 = vector.extract_strided_slice %164 {offsets = [0, 256], sizes = [2, 128], strides = [1, 1]} : vector<2x512xf32> to vector<2x128xf32>
    %178 = math.tanh %177 : vector<2x128xf32>
    %179 = vector.extract_strided_slice %164 {offsets = [0, 384], sizes = [2, 128], strides = [1, 1]} : vector<2x512xf32> to vector<2x128xf32>
    %180 = arith.negf %179 : vector<2x128xf32>
    %181 = math.exp %180 : vector<2x128xf32>
    %cst_46 = arith.constant 1.000000e+00 : f32
    %182 = vector.broadcast %cst_46 : f32 to vector<2x128xf32>
    %183 = arith.addf %182, %181 : vector<2x128xf32>
    %184 = arith.divf %182, %183 : vector<2x128xf32>
    %185 = arith.mulf %176, %157 : vector<2x128xf32>
    %186 = arith.mulf %170, %178 : vector<2x128xf32>
    %187 = arith.addf %185, %186 : vector<2x128xf32>
    %188 = math.tanh %187 : vector<2x128xf32>
    %189 = arith.mulf %184, %188 : vector<2x128xf32>
    %c6_i32 = arith.constant 6 : i32
    %c2_i32_47 = arith.constant 2 : i32
    %190 = arith.muli %c6_i32, %c2_i32_47 : i32
    %191 = arith.index_cast %190 : i32 to index
    %c0_48 = arith.constant 0 : index
    %192 = vector.load %arg13[%191, %c0_48] : memref<16x512xf32, #tpu.memory_space<vmem>>, vector<2x512xf32>
    %cst_49 = arith.constant dense<0.000000e+00> : vector<2x512xf32>
    %193 = tpu.matmul %189, %7, %cst_49 {dimension_numbers = #tpu.dot_dimension_numbers<[1], [0], [0], [1], [0, 0, 1, 1], [], []>} : vector<2x128xf32>, vector<128x512xf32>, vector<2x512xf32> -> vector<2x512xf32>
    %194 = arith.addf %192, %193 : vector<2x512xf32>
    %195 = vector.extract_strided_slice %194 {offsets = [0, 0], sizes = [2, 128], strides = [1, 1]} : vector<2x512xf32> to vector<2x128xf32>
    %196 = arith.negf %195 : vector<2x128xf32>
    %197 = math.exp %196 : vector<2x128xf32>
    %cst_50 = arith.constant 1.000000e+00 : f32
    %198 = vector.broadcast %cst_50 : f32 to vector<2x128xf32>
    %199 = arith.addf %198, %197 : vector<2x128xf32>
    %200 = arith.divf %198, %199 : vector<2x128xf32>
    %201 = vector.extract_strided_slice %194 {offsets = [0, 128], sizes = [2, 128], strides = [1, 1]} : vector<2x512xf32> to vector<2x128xf32>
    %202 = arith.negf %201 : vector<2x128xf32>
    %203 = math.exp %202 : vector<2x128xf32>
    %cst_51 = arith.constant 1.000000e+00 : f32
    %204 = vector.broadcast %cst_51 : f32 to vector<2x128xf32>
    %205 = arith.addf %204, %203 : vector<2x128xf32>
    %206 = arith.divf %204, %205 : vector<2x128xf32>
    %207 = vector.extract_strided_slice %194 {offsets = [0, 256], sizes = [2, 128], strides = [1, 1]} : vector<2x512xf32> to vector<2x128xf32>
    %208 = math.tanh %207 : vector<2x128xf32>
    %209 = vector.extract_strided_slice %194 {offsets = [0, 384], sizes = [2, 128], strides = [1, 1]} : vector<2x512xf32> to vector<2x128xf32>
    %210 = arith.negf %209 : vector<2x128xf32>
    %211 = math.exp %210 : vector<2x128xf32>
    %cst_52 = arith.constant 1.000000e+00 : f32
    %212 = vector.broadcast %cst_52 : f32 to vector<2x128xf32>
    %213 = arith.addf %212, %211 : vector<2x128xf32>
    %214 = arith.divf %212, %213 : vector<2x128xf32>
    %215 = arith.mulf %206, %187 : vector<2x128xf32>
    %216 = arith.mulf %200, %208 : vector<2x128xf32>
    %217 = arith.addf %215, %216 : vector<2x128xf32>
    %218 = math.tanh %217 : vector<2x128xf32>
    %219 = arith.mulf %214, %218 : vector<2x128xf32>
    %c7_i32 = arith.constant 7 : i32
    %c2_i32_53 = arith.constant 2 : i32
    %220 = arith.muli %c7_i32, %c2_i32_53 : i32
    %221 = arith.index_cast %220 : i32 to index
    %c0_54 = arith.constant 0 : index
    %222 = vector.load %arg13[%221, %c0_54] : memref<16x512xf32, #tpu.memory_space<vmem>>, vector<2x512xf32>
    %cst_55 = arith.constant dense<0.000000e+00> : vector<2x512xf32>
    %223 = tpu.matmul %219, %7, %cst_55 {dimension_numbers = #tpu.dot_dimension_numbers<[1], [0], [0], [1], [0, 0, 1, 1], [], []>} : vector<2x128xf32>, vector<128x512xf32>, vector<2x512xf32> -> vector<2x512xf32>
    %224 = arith.addf %222, %223 : vector<2x512xf32>
    %225 = vector.extract_strided_slice %224 {offsets = [0, 0], sizes = [2, 128], strides = [1, 1]} : vector<2x512xf32> to vector<2x128xf32>
    %226 = arith.negf %225 : vector<2x128xf32>
    %227 = math.exp %226 : vector<2x128xf32>
    %cst_56 = arith.constant 1.000000e+00 : f32
    %228 = vector.broadcast %cst_56 : f32 to vector<2x128xf32>
    %229 = arith.addf %228, %227 : vector<2x128xf32>
    %230 = arith.divf %228, %229 : vector<2x128xf32>
    %231 = vector.extract_strided_slice %224 {offsets = [0, 128], sizes = [2, 128], strides = [1, 1]} : vector<2x512xf32> to vector<2x128xf32>
    %232 = arith.negf %231 : vector<2x128xf32>
    %233 = math.exp %232 : vector<2x128xf32>
    %cst_57 = arith.constant 1.000000e+00 : f32
    %234 = vector.broadcast %cst_57 : f32 to vector<2x128xf32>
    %235 = arith.addf %234, %233 : vector<2x128xf32>
    %236 = arith.divf %234, %235 : vector<2x128xf32>
    %237 = vector.extract_strided_slice %224 {offsets = [0, 256], sizes = [2, 128], strides = [1, 1]} : vector<2x512xf32> to vector<2x128xf32>
    %238 = math.tanh %237 : vector<2x128xf32>
    %239 = vector.extract_strided_slice %224 {offsets = [0, 384], sizes = [2, 128], strides = [1, 1]} : vector<2x512xf32> to vector<2x128xf32>
    %240 = arith.negf %239 : vector<2x128xf32>
    %241 = math.exp %240 : vector<2x128xf32>
    %cst_58 = arith.constant 1.000000e+00 : f32
    %242 = vector.broadcast %cst_58 : f32 to vector<2x128xf32>
    %243 = arith.addf %242, %241 : vector<2x128xf32>
    %244 = arith.divf %242, %243 : vector<2x128xf32>
    %245 = arith.mulf %236, %217 : vector<2x128xf32>
    %246 = arith.mulf %230, %238 : vector<2x128xf32>
    %247 = arith.addf %245, %246 : vector<2x128xf32>
    %248 = math.tanh %247 : vector<2x128xf32>
    %249 = arith.mulf %244, %248 : vector<2x128xf32>
    %c8_i32 = arith.constant 8 : i32
    %c0_59 = arith.constant 0 : index
    %c0_60 = arith.constant 0 : index
    %250 = vector.load %arg11[%c0_59, %c0_60] : memref<2x128xf32, #tpu.memory_space<vmem>>, vector<2x128xf32>
    tpu.vector_store %arg11[%c0_59, %c0_60], %249 {strides = array<i32>} : memref<2x128xf32, #tpu.memory_space<vmem>>, vector<2x128xf32>,
    %c0_61 = arith.constant 0 : index
    %c0_62 = arith.constant 0 : index
    %251 = vector.load %arg12[%c0_61, %c0_62] : memref<2x128xf32, #tpu.memory_space<vmem>>, vector<2x128xf32>
    tpu.vector_store %arg12[%c0_61, %c0_62], %247 {strides = array<i32>} : memref<2x128xf32, #tpu.memory_space<vmem>>, vector<2x128xf32>,
    %c0_63 = arith.constant 0 : index
    %c0_64 = arith.constant 0 : index
    %252 = vector.load %arg5[%c0_63, %c0_64] : memref<128x64xf32, #tpu.memory_space<vmem>>, vector<128x64xf32>
    %cst_65 = arith.constant dense<0.000000e+00> : vector<2x64xf32>
    %253 = tpu.matmul %249, %252, %cst_65 {dimension_numbers = #tpu.dot_dimension_numbers<[1], [0], [0], [1], [0, 0, 1, 1], [], []>} : vector<2x128xf32>, vector<128x64xf32>, vector<2x64xf32> -> vector<2x64xf32>
    %c0_66 = arith.constant 0 : index
    %c0_67 = arith.constant 0 : index
    %254 = vector.load %arg1[%c0_66, %c0_67] : memref<2x8xf32, #tpu.memory_space<vmem>>, vector<2x8xf32>
    %c0_68 = arith.constant 0 : index
    %c0_69 = arith.constant 0 : index
    %255 = vector.load %arg6[%c0_68, %c0_69] : memref<8x64xf32, #tpu.memory_space<vmem>>, vector<8x64xf32>
    %cst_70 = arith.constant dense<0.000000e+00> : vector<2x64xf32>
    %256 = tpu.matmul %254, %255, %cst_70 {dimension_numbers = #tpu.dot_dimension_numbers<[1], [0], [0], [1], [0, 0, 1, 1], [], []>} : vector<2x8xf32>, vector<8x64xf32>, vector<2x64xf32> -> vector<2x64xf32>
    %257 = arith.addf %253, %256 : vector<2x64xf32>
    %c0_71 = arith.constant 0 : index
    %c0_72 = arith.constant 0 : index
    %258 = vector.load %arg7[%c0_71, %c0_72] : memref<1x64xf32, #tpu.memory_space<vmem>>, vector<1x64xf32>
    %259 = vector.broadcast %258 : vector<1x64xf32> to vector<2x64xf32>
    %260 = arith.addf %257, %259 : vector<2x64xf32>
    %cst_73 = arith.constant 0.000000e+00 : f32
    %261 = vector.broadcast %cst_73 : f32 to vector<2x64xf32>
    %262 = arith.maximumf %260, %261 : vector<2x64xf32>
    %c0_74 = arith.constant 0 : index
    %c0_75 = arith.constant 0 : index
    %263 = vector.load %arg8[%c0_74, %c0_75] : memref<64x1xf32, #tpu.memory_space<vmem>>, vector<64x1xf32>
    %cst_76 = arith.constant dense<0.000000e+00> : vector<2x1xf32>
    %264 = tpu.matmul %262, %263, %cst_76 {dimension_numbers = #tpu.dot_dimension_numbers<[1], [0], [0], [1], [0, 0, 1, 1], [], []>} : vector<2x64xf32>, vector<64x1xf32>, vector<2x1xf32> -> vector<2x1xf32>
    %c0_77 = arith.constant 0 : index
    %c0_78 = arith.constant 0 : index
    %265 = vector.load %arg9[%c0_77, %c0_78] : memref<1x1xf32, #tpu.memory_space<vmem>>, vector<1x1xf32>
    %266 = vector.broadcast %265 : vector<1x1xf32> to vector<2x1xf32>
    %267 = arith.addf %264, %266 : vector<2x1xf32>
    %c0_79 = arith.constant 0 : index
    %c0_80 = arith.constant 0 : index
    %268 = vector.load %arg10[%c0_79, %c0_80] : memref<2x1xf32, #tpu.memory_space<vmem>>, vector<2x1xf32>
    tpu.vector_store %arg10[%c0_79, %c0_80], %267 {strides = array<i32>} : memref<2x1xf32, #tpu.memory_space<vmem>>, vector<2x1xf32>,
    return
  }
}

</mosaic_0001>

<llo_original>
// kernel: critic_forward.1
$region0: #{critic_forward.1}
  #allocation0 [shape = 'u32[]', space=smem, size = 0x4, offset = 0x4, fixed_abs, tag = 'smem constant byte address 0x4 - core index']
  #allocation1 [shape = 'u32[72,128]{1,0:T(1,128)}', space=vmem, size = 0x9000, scoped, tag = 'internal scratch']
  #allocation2 [shape = 'f32[16,512]{1,0:T(8,128)}', space=vmem, size = 0x8000, scoped, tag = 'scratch operand']
  #allocation3 [shape = 'f32[1,1]{1,0:T(1,128)S(1)}', space=vmem, size = 0x200, scoped, tag = 'scoped memory for critic_forward.1']
  %s0 = inlined_call_operand.vmem [shape: f32[16,16], index: 0, kind: input, shape index: {}]
  %s1 = inlined_call_operand.vmem [shape: f32[2,8], index: 1, kind: input, shape index: {}]
  %s2 = inlined_call_operand.vmem [shape: f32[16,512], index: 2, kind: input, shape index: {}]
  %s3 = inlined_call_operand.hbm [shape: f32[128,512], index: 3, kind: input, shape index: {}]
  %s4 = inlined_call_operand.vmem [shape: f32[1,512], index: 4, kind: input, shape index: {}]
  %s5 = inlined_call_operand.vmem [shape: f32[128,64], index: 5, kind: input, shape index: {}]
  %s6 = inlined_call_operand.vmem [shape: f32[8,64], index: 6, kind: input, shape index: {}]
  %s7 = inlined_call_operand.vmem [shape: f32[1,64], index: 7, kind: input, shape index: {}]
  %s8 = inlined_call_operand.vmem [shape: f32[64,1], index: 8, kind: input, shape index: {}]
  %s9 = inlined_call_operand.<no memory space> [shape: f32[1,1], index: 9, kind: input, shape index: {}]
  %s10 = inlined_call_operand.vmem [shape: f32[2,1], index: 10, kind: output, shape index: {0}]
  %s11 = inlined_call_operand.hbm [shape: f32[2,128], index: 11, kind: output, shape index: {1}]
  %s12 = inlined_call_operand.hbm [shape: f32[2,128], index: 12, kind: output, shape index: {2}]
  %13 = xla_tuple %s10, %s11, %s12
  %s14 = sld [smem:[#allocation0]]
  $region70: #{critic_forward.1} parent=0
    _
  %s16 = ssub.s32 1, %s14
  %s17 = scalar_select 0, %s16, %s14
  %v18 = vstv %s9
  %19 = vst [vmem:[#allocation3] sm:$0x1] %v18
  $region1: #{critic_forward.1} parent=0
    #allocation4 [shape = 'u8[262144]{0}', space=vmem, size = 0x40000, scoped, tag = 'input window, operand 3, single buffered']
    #allocation5 [shape = 's32[1]{0}', space=sflag, size = 0x4, scoped, tag = 'scoped memory for critic_forward.1']
    #allocation6 [shape = 's32[1]{0}', space=sflag, size = 0x4, scoped, tag = 'scoped memory for critic_forward.1']
    #allocation7 [shape = 'u8[1024]{0}', space=vmem, size = 0x400, scoped, tag = 'output window, operand 1, single buffered']
    #allocation8 [shape = 'u8[1024]{0}', space=vmem, size = 0x400, scoped, tag = 'output window, operand 2, single buffered']
    #allocation9 [shape = 's32[1]{0}', space=sflag, size = 0x4, scoped, tag = 'scoped memory for critic_forward.1']
    %20 = vsyncpa [#allocation5], 0
    %21 = vsyncpa [#allocation6], 0
    %22 = vsyncpa [#allocation9], 0
    // Predicated region
    $region2: #{critic_forward.1} parent=1 // pred_check
      _
    $region3: #{critic_forward.1} parent=1 // pred_check_branch
      %24 = sbr.rel (0) target = $region5
    $region4: #{critic_forward.1} parent=1 // pred_region
      _
    $region5: #{critic_forward.1} parent=1 // pred_fallthru
      _
    // Predicated region
    $region6: #{critic_forward.1} parent=1 // pred_check
      _
    $region7: #{critic_forward.1} parent=1 // pred_check_branch
      %26 = sbr.rel (0) target = $region9
    $region8: #{critic_forward.1} parent=1 // pred_region
      _
    $region9: #{critic_forward.1} parent=1 // pred_fallthru
      _
    // Predicated region
    $region10: #{critic_forward.1} parent=1 // pred_check
      _
    $region11: #{critic_forward.1} parent=1 // pred_check_branch
      %28 = sbr.rel (0) target = $region13
    $region12: #{critic_forward.1} parent=1 // pred_region
      _
    $region13: #{critic_forward.1} parent=1 // pred_fallthru
      _
    // Predicated region
    $region14: #{critic_forward.1} parent=1 // pred_check
      _
    $region15: #{critic_forward.1} parent=1 // pred_check_branch
      %30 = sbr.rel (0) target = $region17
    $region16: #{critic_forward.1} parent=1 // pred_region
      %32 = vsyncadd [#allocation5], 0
      %s33 = sshll.u32 %s3, 4
      %s34 = int_to_ptr.hbm [resolvable:$true] %s33
      %s35 = sshll.u32 [#allocation4], 4
      %s36 = int_to_ptr.vmem [resolvable:$true] %s35
      %41 = dma.hbm_to_vmem [thread:$0]  %s34, 8192, %s36, [#allocation5], 512, 512, 32
    $region17: #{critic_forward.1} parent=1 // pred_fallthru
      _
    // Predicated region
    $region18: #{critic_forward.1} parent=1 // pred_check
      _
    $region19: #{critic_forward.1} parent=1 // pred_check_branch
      %43 = sbr.rel (0) target = $region21
    $region20: #{critic_forward.1} parent=1 // pred_region
      _
    $region21: #{critic_forward.1} parent=1 // pred_fallthru
      _
    // Predicated region
    $region22: #{critic_forward.1} parent=1 // pred_check
      _
    $region23: #{critic_forward.1} parent=1 // pred_check_branch
      %45 = sbr.rel (0) target = $region25
    $region24: #{critic_forward.1} parent=1 // pred_region
      _
    $region25: #{critic_forward.1} parent=1 // pred_fallthru
      _
    // Predicated region
    $region26: #{critic_forward.1} parent=1 // pred_check
      _
    $region27: #{critic_forward.1} parent=1 // pred_check_branch
      %47 = sbr.rel (0) target = $region29
    $region28: #{critic_forward.1} parent=1 // pred_region
      _
    $region29: #{critic_forward.1} parent=1 // pred_fallthru
      _
    // Predicated region
    $region30: #{critic_forward.1} parent=1 // pred_check
      _
    $region31: #{critic_forward.1} parent=1 // pred_check_branch
      %49 = sbr.rel (0) target = $region33
    $region32: #{critic_forward.1} parent=1 // pred_region
      _
    $region33: #{critic_forward.1} parent=1 // pred_fallthru
      _
    // Predicated region
    $region34: #{critic_forward.1} parent=1 // pred_check
      _
    $region35: #{critic_forward.1} parent=1 // pred_check_branch
      %51 = sbr.rel (0) target = $region37
    $region36: #{critic_forward.1} parent=1 // pred_region
      _
    $region37: #{critic_forward.1} parent=1 // pred_fallthru
      _
    // Predicated region
    $region38: #{critic_forward.1} parent=1 // pred_check
      _
    $region39: #{critic_forward.1} parent=1 // pred_check_branch
      %53 = sbr.rel (0) target = $region41
    $region40: #{critic_forward.1} parent=1 // pred_region
      _
    $region41: #{critic_forward.1} parent=1 // pred_fallthru
      _
    // Predicated region
    $region42: #{critic_forward.1} parent=1 // pred_check
      _
    $region43: #{critic_forward.1} parent=1 // pred_check_branch
      %55 = sbr.rel (0) target = $region45
    $region44: #{critic_forward.1} parent=1 // pred_region
      %57 = dma.done [#allocation5], 8192
    $region45: #{critic_forward.1} parent=1 // pred_fallthru
      _
    %v58 = vld [vmem:[%s0] sm:$0xff]
    %v59 = vld [vmem:[%s0 + $0x8] sm:$0xff]
    %v60 = vld [vmem:[%s2] sm:$0xff]
    %v61 = vld [vmem:[%s2 + $0x8] sm:$0xff]
    %v62 = vld [vmem:[%s2 + $0x10] sm:$0xff]
    %v63 = vld [vmem:[%s2 + $0x18] sm:$0xff]
    %v64 = vld [vmem:[%s2 + $0x20] sm:$0xff]
    %v65 = vld [vmem:[%s2 + $0x28] sm:$0xff]
    %v66 = vld [vmem:[%s2 + $0x30] sm:$0xff]
    %v67 = vld [vmem:[%s2 + $0x38] sm:$0xff]
    %v68 = vld [vmem:[%s4] sm:$0xf]
    %v70 = vperm.slane %v68, 0
    %v71 = vperm.slane %v68, 1
    %v72 = vperm.slane %v68, 2
    %v73 = vperm.slane %v68, 3
    %vm78 = vcmask 130048
    %v80 = vsel %vm78, %v58, 0
    %v83 = vsel %vm78, %v59, 0
    %85 = vmatpush.msra.mxu0 0.0
    %86 = vmatpush.msra.mxu0 0.0
    %87 = vmatpush.msra.mxu0 0.0
    %88 = vmatpush.msra.mxu0 0.0
    %89 = vmatpush.msra.mxu0 0.0
    %90 = vmatpush.msra.mxu0 0.0
    %91 = vmatpush.msra.mxu0 0.0
    %92 = vmatpush.msra.mxu0 0.0
    %93 = vmatpush.msra.mxu0 0.0
    %94 = vmatpush.msra.mxu0 0.0
    %95 = vmatpush.msra.mxu0 0.0
    %96 = vmatpush.msra.mxu0 0.0
    %97 = vmatpush.msra.mxu0 0.0
    %98 = vmatpush.msra.mxu0 0.0
    %99 = vmatpush.msra.mxu0 %v64
    %100 = vmatpush.msra.mxu0 %v60
    %101 = vmatmul.f32.gmra.mxu0 %v80
    %v102 = vpop.f32.mrf.mxu0
    %v103 = vadd.f32 %v70, %v102
    %104 = vmatmul.f32.gmra.mxu0 %v83
    %v105 = vpop.f32.mrf.mxu0
    %v106 = vadd.f32 %v70, %v105
    %107 = vdwg.mxu0
    %108 = vmatpush.msra.mxu0 0.0
    %109 = vmatpush.msra.mxu0 0.0
    %110 = vmatpush.msra.mxu0 0.0
    %111 = vmatpush.msra.mxu0 0.0
    %112 = vmatpush.msra.mxu0 0.0
    %113 = vmatpush.msra.mxu0 0.0
    %114 = vmatpush.msra.mxu0 0.0
    %115 = vmatpush.msra.mxu0 0.0
    %116 = vmatpush.msra.mxu0 0.0
    %117 = vmatpush.msra.mxu0 0.0
    %118 = vmatpush.msra.mxu0 0.0
    %119 = vmatpush.msra.mxu0 0.0
    %120 = vmatpush.msra.mxu0 0.0
    %121 = vmatpush.msra.mxu0 0.0
    %122 = vmatpush.msra.mxu0 %v65
    %123 = vmatpush.msra.mxu0 %v61
    %124 = vmatmul.f32.gmra.mxu0 %v80
    %v125 = vpop.f32.mrf.mxu0
    %v126 = vadd.f32 %v71, %v125
    %127 = vmatmul.f32.gmra.mxu0 %v83
    %v128 = vpop.f32.mrf.mxu0
    %v129 = vadd.f32 %v71, %v128
    %130 = vdwg.mxu0
    %131 = vmatpush.msra.mxu0 0.0
    %132 = vmatpush.msra.mxu0 0.0
    %133 = vmatpush.msra.mxu0 0.0
    %134 = vmatpush.msra.mxu0 0.0
    %135 = vmatpush.msra.mxu0 0.0
    %136 = vmatpush.msra.mxu0 0.0
    %137 = vmatpush.msra.mxu0 0.0
    %138 = vmatpush.msra.mxu0 0.0
    %139 = vmatpush.msra.mxu0 0.0
    %140 = vmatpush.msra.mxu0 0.0
    %141 = vmatpush.msra.mxu0 0.0
    %142 = vmatpush.msra.mxu0 0.0
    %143 = vmatpush.msra.mxu0 0.0
    %144 = vmatpush.msra.mxu0 0.0
    %145 = vmatpush.msra.mxu0 %v66
    %146 = vmatpush.msra.mxu0 %v62
    %147 = vmatmul.f32.gmra.mxu0 %v80
    %v148 = vpop.f32.mrf.mxu0
    %v149 = vadd.f32 %v72, %v148
    %150 = vmatmul.f32.gmra.mxu0 %v83
    %v151 = vpop.f32.mrf.mxu0
    %v152 = vadd.f32 %v72, %v151
    %153 = vdwg.mxu0
    %154 = vmatpush.msra.mxu0 0.0
    %155 = vmatpush.msra.mxu0 0.0
    %156 = vmatpush.msra.mxu0 0.0
    %157 = vmatpush.msra.mxu0 0.0
    %158 = vmatpush.msra.mxu0 0.0
    %159 = vmatpush.msra.mxu0 0.0
    %160 = vmatpush.msra.mxu0 0.0
    %161 = vmatpush.msra.mxu0 0.0
    %162 = vmatpush.msra.mxu0 0.0
    %163 = vmatpush.msra.mxu0 0.0
    %164 = vmatpush.msra.mxu0 0.0
    %165 = vmatpush.msra.mxu0 0.0
    %166 = vmatpush.msra.mxu0 0.0
    %167 = vmatpush.msra.mxu0 0.0
    %168 = vmatpush.msra.mxu0 %v67
    %169 = vmatpush.msra.mxu0 %v63
    %170 = vmatmul.f32.gmra.mxu0 %v80
    %v171 = vpop.f32.mrf.mxu0
    %v172 = vadd.f32 %v73, %v171
    %173 = vmatmul.f32.gmra.mxu0 %v83
    %v174 = vpop.f32.mrf.mxu0
    %v175 = vadd.f32 %v73, %v174
    %176 = vdwg.mxu0
    %177 = vst [vmem:[#allocation2] sm:$0xff] %v103
    %178 = vst [vmem:[#allocation2 + $0x8] sm:$0xff] %v126
    %179 = vst [vmem:[#allocation2 + $0x10] sm:$0xff] %v149
    %180 = vst [vmem:[#allocation2 + $0x18] sm:$0xff] %v172
    %181 = vst [vmem:[#allocation2 + $0x20] sm:$0xff] %v106
    %182 = vst [vmem:[#allocation2 + $0x28] sm:$0xff] %v129
    %183 = vst [vmem:[#allocation2 + $0x30] sm:$0xff] %v152
    %184 = vst [vmem:[#allocation2 + $0x38] sm:$0xff] %v175
    %v185 = vld [vmem:[#allocation4] sm:$0xff]
    %v186 = vld [vmem:[#allocation4 + $0x8] sm:$0xff]
    %v187 = vld [vmem:[#allocation4 + $0x10] sm:$0xff]
    %v188 = vld [vmem:[#allocation4 + $0x18] sm:$0xff]
    %v189 = vld [vmem:[#allocation4 + $0x20] sm:$0xff]
    %v190 = vld [vmem:[#allocation4 + $0x28] sm:$0xff]
    %v191 = vld [vmem:[#allocation4 + $0x30] sm:$0xff]
    %v192 = vld [vmem:[#allocation4 + $0x38] sm:$0xff]
    %v193 = vld [vmem:[#allocation4 + $0x40] sm:$0xff]
    %v194 = vld [vmem:[#allocation4 + $0x48] sm:$0xff]
    %v195 = vld [vmem:[#allocation4 + $0x50] sm:$0xff]
    %v196 = vld [vmem:[#allocation4 + $0x58] sm:$0xff]
    %v197 = vld [vmem:[#allocation4 + $0x60] sm:$0xff]
    %v198 = vld [vmem:[#allocation4 + $0x68] sm:$0xff]
    %v199 = vld [vmem:[#allocation4 + $0x70] sm:$0xff]
    %v200 = vld [vmem:[#allocation4 + $0x78] sm:$0xff]
    %v201 = vld [vmem:[#allocation4 + $0x80] sm:$0xff]
    %v202 = vld [vmem:[#allocation4 + $0x88] sm:$0xff]
    %v203 = vld [vmem:[#allocation4 + $0x90] sm:$0xff]
    %v204 = vld [vmem:[#allocation4 + $0x98] sm:$0xff]
    %v205 = vld [vmem:[#allocation4 + $0xa0] sm:$0xff]
    %v206 = vld [vmem:[#allocation4 + $0xa8] sm:$0xff]
    %v207 = vld [vmem:[#allocation4 + $0xb0] sm:$0xff]
    %v208 = vld [vmem:[#allocation4 + $0xb8] sm:$0xff]
    %v209 = vld [vmem:[#allocation4 + $0xc0] sm:$0xff]
    %v210 = vld [vmem:[#allocation4 + $0xc8] sm:$0xff]
    %v211 = vld [vmem:[#allocation4 + $0xd0] sm:$0xff]
    %v212 = vld [vmem:[#allocation4 + $0xd8] sm:$0xff]
    %v213 = vld [vmem:[#allocation4 + $0xe0] sm:$0xff]
    %v214 = vld [vmem:[#allocation4 + $0xe8] sm:$0xff]
    %v215 = vld [vmem:[#allocation4 + $0xf0] sm:$0xff]
    %v216 = vld [vmem:[#allocation4 + $0xf8] sm:$0xff]
    %v217 = vld [vmem:[#allocation4 + $0x100] sm:$0xff]
    %v218 = vld [vmem:[#allocation4 + $0x108] sm:$0xff]
    %v219 = vld [vmem:[#allocation4 + $0x110] sm:$0xff]
    %v220 = vld [vmem:[#allocation4 + $0x118] sm:$0xff]
    %v221 = vld [vmem:[#allocation4 + $0x120] sm:$0xff]
    %v222 = vld [vmem:[#allocation4 + $0x128] sm:$0xff]
    %v223 = vld [vmem:[#allocation4 + $0x130] sm:$0xff]
    %v224 = vld [vmem:[#allocation4 + $0x138] sm:$0xff]
    %v225 = vld [vmem:[#allocation4 + $0x140] sm:$0xff]
    %v226 = vld [vmem:[#allocation4 + $0x148] sm:$0xff]
    %v227 = vld [vmem:[#allocation4 + $0x150] sm:$0xff]
    %v228 = vld [vmem:[#allocation4 + $0x158] sm:$0xff]
    %v229 = vld [vmem:[#allocation4 + $0x160] sm:$0xff]
    %v230 = vld [vmem:[#allocation4 + $0x168] sm:$0xff]
    %v231 = vld [vmem:[#allocation4 + $0x170] sm:$0xff]
    %v232 = vld [vmem:[#allocation4 + $0x178] sm:$0xff]
    %v233 = vld [vmem:[#allocation4 + $0x180] sm:$0xff]
    %v234 = vld [vmem:[#allocation4 + $0x188] sm:$0xff]
    %v235 = vld [vmem:[#allocation4 + $0x190] sm:$0xff]
    %v236 = vld [vmem:[#allocation4 + $0x198] sm:$0xff]
    %v237 = vld [vmem:[#allocation4 + $0x1a0] sm:$0xff]
    %v238 = vld [vmem:[#allocation4 + $0x1a8] sm:$0xff]
    %v239 = vld [vmem:[#allocation4 + $0x1b0] sm:$0xff]
    %v240 = vld [vmem:[#allocation4 + $0x1b8] sm:$0xff]
    %v241 = vld [vmem:[#allocation4 + $0x1c0] sm:$0xff]
    %v242 = vld [vmem:[#allocation4 + $0x1c8] sm:$0xff]
    %v243 = vld [vmem:[#allocation4 + $0x1d0] sm:$0xff]
    %v244 = vld [vmem:[#allocation4 + $0x1d8] sm:$0xff]
    %v245 = vld [vmem:[#allocation4 + $0x1e0] sm:$0xff]
    %v246 = vld [vmem:[#allocation4 + $0x1e8] sm:$0xff]
    %v247 = vld [vmem:[#allocation4 + $0x1f0] sm:$0xff]
    %v248 = vld [vmem:[#allocation4 + $0x1f8] sm:$0xff]
    %v249 = vld [vmem:[#allocation2] sm:$0x3]
    %v250 = vld [vmem:[#allocation2 + $0x8] sm:$0x3]
    %v251 = vld [vmem:[#allocation2 + $0x10] sm:$0x3]
    %v252 = vld [vmem:[#allocation2 + $0x18] sm:$0x3]
    %253 = vmatpush.msra.mxu0 %v245
    %254 = vmatpush.msra.mxu0 %v241
    %255 = vmatpush.msra.mxu0 %v237
    %256 = vmatpush.msra.mxu0 %v233
    %257 = vmatpush.msra.mxu0 %v229
    %258 = vmatpush.msra.mxu0 %v225
    %259 = vmatpush.msra.mxu0 %v221
    %260 = vmatpush.msra.mxu0 %v217
    %261 = vmatpush.msra.mxu0 %v213
    %262 = vmatpush.msra.mxu0 %v209
    %263 = vmatpush.msra.mxu0 %v205
    %264 = vmatpush.msra.mxu0 %v201
    %265 = vmatpush.msra.mxu0 %v197
    %266 = vmatpush.msra.mxu0 %v193
    %267 = vmatpush.msra.mxu0 %v189
    %268 = vmatpush.msra.mxu0 %v185
    %269 = vmatmul.f32.gmra.mxu0 0.0
    %v270 = vpop.f32.mrf.mxu0
    %v271 = vadd.f32 0.0, %v270
    %272 = vdwg.mxu0
    %273 = vmatpush.msra.mxu0 %v246
    %274 = vmatpush.msra.mxu0 %v242
    %275 = vmatpush.msra.mxu0 %v238
    %276 = vmatpush.msra.mxu0 %v234
    %277 = vmatpush.msra.mxu0 %v230
    %278 = vmatpush.msra.mxu0 %v226
    %279 = vmatpush.msra.mxu0 %v222
    %280 = vmatpush.msra.mxu0 %v218
    %281 = vmatpush.msra.mxu0 %v214
    %282 = vmatpush.msra.mxu0 %v210
    %283 = vmatpush.msra.mxu0 %v206
    %284 = vmatpush.msra.mxu0 %v202
    %285 = vmatpush.msra.mxu0 %v198
    %286 = vmatpush.msra.mxu0 %v194
    %287 = vmatpush.msra.mxu0 %v190
    %288 = vmatpush.msra.mxu0 %v186
    %289 = vmatmul.f32.gmra.mxu0 0.0
    %v290 = vpop.f32.mrf.mxu0
    %v291 = vadd.f32 0.0, %v290
    %292 = vdwg.mxu0
    %293 = vmatpush.msra.mxu0 %v247
    %294 = vmatpush.msra.mxu0 %v243
    %295 = vmatpush.msra.mxu0 %v239
    %296 = vmatpush.msra.mxu0 %v235
    %297 = vmatpush.msra.mxu0 %v231
    %298 = vmatpush.msra.mxu0 %v227
    %299 = vmatpush.msra.mxu0 %v223
    %300 = vmatpush.msra.mxu0 %v219
    %301 = vmatpush.msra.mxu0 %v215
    %302 = vmatpush.msra.mxu0 %v211
    %303 = vmatpush.msra.mxu0 %v207
    %304 = vmatpush.msra.mxu0 %v203
    %305 = vmatpush.msra.mxu0 %v199
    %306 = vmatpush.msra.mxu0 %v195
    %307 = vmatpush.msra.mxu0 %v191
    %308 = vmatpush.msra.mxu0 %v187
    %309 = vmatmul.f32.gmra.mxu0 0.0
    %v310 = vpop.f32.mrf.mxu0
    %v311 = vadd.f32 0.0, %v310
    %312 = vdwg.mxu0
    %313 = vmatpush.msra.mxu0 %v248
    %314 = vmatpush.msra.mxu0 %v244
    %315 = vmatpush.msra.mxu0 %v240
    %316 = vmatpush.msra.mxu0 %v236
    %317 = vmatpush.msra.mxu0 %v232
    %318 = vmatpush.msra.mxu0 %v228
    %319 = vmatpush.msra.mxu0 %v224
    %320 = vmatpush.msra.mxu0 %v220
    %321 = vmatpush.msra.mxu0 %v216
    %322 = vmatpush.msra.mxu0 %v212
    %323 = vmatpush.msra.mxu0 %v208
    %324 = vmatpush.msra.mxu0 %v204
    %325 = vmatpush.msra.mxu0 %v200
    %326 = vmatpush.msra.mxu0 %v196
    %327 = vmatpush.msra.mxu0 %v192
    %328 = vmatpush.msra.mxu0 %v188
    %329 = vmatmul.f32.gmra.mxu0 0.0
    %v330 = vpop.f32.mrf.mxu0
    %v331 = vadd.f32 0.0, %v330
    %332 = vdwg.mxu0
    %v333 = vadd.f32 %v249, %v271
    %v334 = vadd.f32 %v250, %v291
    %v335 = vadd.f32 %v251, %v311
    %v336 = vadd.f32 %v252, %v331
    %v337 = vxor.u32 %v333, 2147483648
    %v338 = vmul.f32 %v337, 1.442695
    %v339 = vpow.pop %v338
    %v340 = vadd.f32 %v339, 1.0
    %v341 = vrcp.pop %v340
    %v342 = vmul.f32 %v340, %v341
    %v343 = vsub.f32 1.0, %v342
    %v344 = vmul.f32 %v341, %v343
    %v345 = vadd.f32 %v341, %v344
    %vm346 = vweird.f32 %v340
    %vm347 = vweird.f32 %v341
    %vm348 = vmor %vm346, %vm347
    %v349 = vsel %vm348, %v341, %v345
    %v350 = vand.u32 2147483647, %v340
    %vm351 = vcmp.eq.f32.partialorder %v350, 8.507059e+37
    %v352 = vand.u32 %v340, 2147483648
    %v353 = vor.u32 1.1754944e-38, %v352
    %v354 = vsel %vm351, %v353, %v349
    %v355 = vmul.f32 1.0, %v354
    %v356 = vxor.u32 %v334, 2147483648
    %v357 = vmul.f32 %v356, 1.442695
    %v358 = vpow.pop %v357
    %v359 = vadd.f32 %v358, 1.0
    %v360 = vrcp.pop %v359
    %v361 = vmul.f32 %v359, %v360
    %v362 = vsub.f32 1.0, %v361
    %v363 = vmul.f32 %v360, %v362
    %v364 = vadd.f32 %v360, %v363
    %vm365 = vweird.f32 %v359
    %vm366 = vweird.f32 %v360
    %vm367 = vmor %vm365, %vm366
    %v368 = vsel %vm367, %v360, %v364
    %v369 = vand.u32 2147483647, %v359
    %vm370 = vcmp.eq.f32.partialorder %v369, 8.507059e+37
    %v371 = vand.u32 %v359, 2147483648
    %v372 = vor.u32 1.1754944e-38, %v371
    %v373 = vsel %vm370, %v372, %v368
    %v374 = vmul.f32 1.0, %v373
    %v375 = vtanh.pop %v335
    %v376 = vxor.u32 %v336, 2147483648
    %v377 = vmul.f32 %v376, 1.442695
    %v378 = vpow.pop %v377
    %v379 = vadd.f32 %v378, 1.0
    %v380 = vrcp.pop %v379
    %v381 = vmul.f32 %v379, %v380
    %v382 = vsub.f32 1.0, %v381
    %v383 = vmul.f32 %v380, %v382
    %v384 = vadd.f32 %v380, %v383
    %vm385 = vweird.f32 %v379
    %vm386 = vweird.f32 %v380
    %vm387 = vmor %vm385, %vm386
    %v388 = vsel %vm387, %v380, %v384
    %v389 = vand.u32 2147483647, %v379
    %vm390 = vcmp.eq.f32.partialorder %v389, 8.507059e+37
    %v391 = vand.u32 %v379, 2147483648
    %v392 = vor.u32 1.1754944e-38, %v391
    %v393 = vsel %vm390, %v392, %v388
    %v394 = vmul.f32 1.0, %v393
    %v395 = vmul.f32 %v374, 0.0
    %v396 = vmul.f32 %v355, %v375
    %v397 = vadd.f32 %v395, %v396
    %v398 = vtanh.pop %v397
    %v399 = vmul.f32 %v394, %v398
    %v400 = vld [vmem:[#allocation2] sm:$0xc]
    %v401 = vld [vmem:[#allocation2 + $0x8] sm:$0xc]
    %v402 = vld [vmem:[#allocation2 + $0x10] sm:$0xc]
    %v403 = vld [vmem:[#allocation2 + $0x18] sm:$0xc]
    %404 = vmatpush.msra.mxu0 %v245
    %405 = vmatpush.msra.mxu0 %v241
    %406 = vmatpush.msra.mxu0 %v237
    %407 = vmatpush.msra.mxu0 %v233
    %408 = vmatpush.msra.mxu0 %v229
    %409 = vmatpush.msra.mxu0 %v225
    %410 = vmatpush.msra.mxu0 %v221
    %411 = vmatpush.msra.mxu0 %v217
    %412 = vmatpush.msra.mxu0 %v213
    %413 = vmatpush.msra.mxu0 %v209
    %414 = vmatpush.msra.mxu0 %v205
    %415 = vmatpush.msra.mxu0 %v201
    %416 = vmatpush.msra.mxu0 %v197
    %417 = vmatpush.msra.mxu0 %v193
    %418 = vmatpush.msra.mxu0 %v189
    %419 = vmatpush.msra.mxu0 %v185
    %420 = vmatmul.f32.gmra.mxu0 %v399
    %v421 = vpop.f32.mrf.mxu0
    %v422 = vadd.f32 0.0, %v421
    %423 = vdwg.mxu0
    %424 = vmatpush.msra.mxu0 %v246
    %425 = vmatpush.msra.mxu0 %v242
    %426 = vmatpush.msra.mxu0 %v238
    %427 = vmatpush.msra.mxu0 %v234
    %428 = vmatpush.msra.mxu0 %v230
    %429 = vmatpush.msra.mxu0 %v226
    %430 = vmatpush.msra.mxu0 %v222
    %431 = vmatpush.msra.mxu0 %v218
    %432 = vmatpush.msra.mxu0 %v214
    %433 = vmatpush.msra.mxu0 %v210
    %434 = vmatpush.msra.mxu0 %v206
    %435 = vmatpush.msra.mxu0 %v202
    %436 = vmatpush.msra.mxu0 %v198
    %437 = vmatpush.msra.mxu0 %v194
    %438 = vmatpush.msra.mxu0 %v190
    %439 = vmatpush.msra.mxu0 %v186
    %440 = vmatmul.f32.gmra.mxu0 %v399
    %v441 = vpop.f32.mrf.mxu0
    %v442 = vadd.f32 0.0, %v441
    %443 = vdwg.mxu0
    %444 = vmatpush.msra.mxu0 %v247
    %445 = vmatpush.msra.mxu0 %v243
    %446 = vmatpush.msra.mxu0 %v239
    %447 = vmatpush.msra.mxu0 %v235
    %448 = vmatpush.msra.mxu0 %v231
    %449 = vmatpush.msra.mxu0 %v227
    %450 = vmatpush.msra.mxu0 %v223
    %451 = vmatpush.msra.mxu0 %v219
    %452 = vmatpush.msra.mxu0 %v215
    %453 = vmatpush.msra.mxu0 %v211
    %454 = vmatpush.msra.mxu0 %v207
    %455 = vmatpush.msra.mxu0 %v203
    %456 = vmatpush.msra.mxu0 %v199
    %457 = vmatpush.msra.mxu0 %v195
    %458 = vmatpush.msra.mxu0 %v191
    %459 = vmatpush.msra.mxu0 %v187
    %460 = vmatmul.f32.gmra.mxu0 %v399
    %v461 = vpop.f32.mrf.mxu0
    %v462 = vadd.f32 0.0, %v461
    %463 = vdwg.mxu0
    %464 = vmatpush.msra.mxu0 %v248
    %465 = vmatpush.msra.mxu0 %v244
    %466 = vmatpush.msra.mxu0 %v240
    %467 = vmatpush.msra.mxu0 %v236
    %468 = vmatpush.msra.mxu0 %v232
    %469 = vmatpush.msra.mxu0 %v228
    %470 = vmatpush.msra.mxu0 %v224
    %471 = vmatpush.msra.mxu0 %v220
    %472 = vmatpush.msra.mxu0 %v216
    %473 = vmatpush.msra.mxu0 %v212
    %474 = vmatpush.msra.mxu0 %v208
    %475 = vmatpush.msra.mxu0 %v204
    %476 = vmatpush.msra.mxu0 %v200
    %477 = vmatpush.msra.mxu0 %v196
    %478 = vmatpush.msra.mxu0 %v192
    %479 = vmatpush.msra.mxu0 %v188
    %480 = vmatmul.f32.gmra.mxu0 %v399
    %v481 = vpop.f32.mrf.mxu0
    %v482 = vadd.f32 0.0, %v481
    %483 = vdwg.mxu0
    %v488 = vrot.slane %v422, 6
    %v489 = vrot.slane %v442, 6
    %v490 = vrot.slane %v462, 6
    %v491 = vrot.slane %v482, 6
    %v496 = vadd.f32 %v400, %v488
    %v497 = vadd.f32 %v401, %v489
    %v498 = vadd.f32 %v402, %v490
    %v499 = vadd.f32 %v403, %v491
    %v500 = vxor.u32 %v496, 2147483648
    %v501 = vmul.f32 %v500, 1.442695
    %v502 = vpow.pop %v501
    %v503 = vadd.f32 %v502, 1.0
    %v504 = vrcp.pop %v503
    %v505 = vmul.f32 %v503, %v504
    %v506 = vsub.f32 1.0, %v505
    %v507 = vmul.f32 %v504, %v506
    %v508 = vadd.f32 %v504, %v507
    %vm509 = vweird.f32 %v503
    %vm510 = vweird.f32 %v504
    %vm511 = vmor %vm509, %vm510
    %v512 = vsel %vm511, %v504, %v508
    %v513 = vand.u32 2147483647, %v503
    %vm514 = vcmp.eq.f32.partialorder %v513, 8.507059e+37
    %v515 = vand.u32 %v503, 2147483648
    %v516 = vor.u32 1.1754944e-38, %v515
    %v517 = vsel %vm514, %v516, %v512
    %v518 = vmul.f32 1.0, %v517
    %v519 = vxor.u32 %v497, 2147483648
    %v520 = vmul.f32 %v519, 1.442695
    %v521 = vpow.pop %v520
    %v522 = vadd.f32 %v521, 1.0
    %v523 = vrcp.pop %v522
    %v524 = vmul.f32 %v522, %v523
    %v525 = vsub.f32 1.0, %v524
    %v526 = vmul.f32 %v523, %v525
    %v527 = vadd.f32 %v523, %v526
    %vm528 = vweird.f32 %v522
    %vm529 = vweird.f32 %v523
    %vm530 = vmor %vm528, %vm529
    %v531 = vsel %vm530, %v523, %v527
    %v532 = vand.u32 2147483647, %v522
    %vm533 = vcmp.eq.f32.partialorder %v532, 8.507059e+37
    %v534 = vand.u32 %v522, 2147483648
    %v535 = vor.u32 1.1754944e-38, %v534
    %v536 = vsel %vm533, %v535, %v531
    %v537 = vmul.f32 1.0, %v536
    %v538 = vtanh.pop %v498
    %v539 = vxor.u32 %v499, 2147483648
    %v540 = vmul.f32 %v539, 1.442695
    %v541 = vpow.pop %v540
    %v542 = vadd.f32 %v541, 1.0
    %v543 = vrcp.pop %v542
    %v544 = vmul.f32 %v542, %v543
    %v545 = vsub.f32 1.0, %v544
    %v546 = vmul.f32 %v543, %v545
    %v547 = vadd.f32 %v543, %v546
    %vm548 = vweird.f32 %v542
    %vm549 = vweird.f32 %v543
    %vm550 = vmor %vm548, %vm549
    %v551 = vsel %vm550, %v543, %v547
    %v552 = vand.u32 2147483647, %v542
    %vm553 = vcmp.eq.f32.partialorder %v552, 8.507059e+37
    %v554 = vand.u32 %v542, 2147483648
    %v555 = vor.u32 1.1754944e-38, %v554
    %v556 = vsel %vm553, %v555, %v551
    %v557 = vmul.f32 1.0, %v556
    %v559 = vrot.slane %v397, 6
    %v561 = vmul.f32 %v537, %v559
    %v562 = vmul.f32 %v518, %v538
    %v563 = vadd.f32 %v561, %v562
    %v564 = vtanh.pop %v563
    %v565 = vmul.f32 %v557, %v564
    %v566 = vld [vmem:[#allocation2] sm:$0x30]
    %v567 = vld [vmem:[#allocation2 + $0x8] sm:$0x30]
    %v568 = vld [vmem:[#allocation2 + $0x10] sm:$0x30]
    %v569 = vld [vmem:[#allocation2 + $0x18] sm:$0x30]
    %v571 = vrot.slane %v565, 2
    %573 = vmatpush.msra.mxu0 %v245
    %574 = vmatpush.msra.mxu0 %v241
    %575 = vmatpush.msra.mxu0 %v237
    %576 = vmatpush.msra.mxu0 %v233
    %577 = vmatpush.msra.mxu0 %v229
    %578 = vmatpush.msra.mxu0 %v225
    %579 = vmatpush.msra.mxu0 %v221
    %580 = vmatpush.msra.mxu0 %v217
    %581 = vmatpush.msra.mxu0 %v213
    %582 = vmatpush.msra.mxu0 %v209
    %583 = vmatpush.msra.mxu0 %v205
    %584 = vmatpush.msra.mxu0 %v201
    %585 = vmatpush.msra.mxu0 %v197
    %586 = vmatpush.msra.mxu0 %v193
    %587 = vmatpush.msra.mxu0 %v189
    %588 = vmatpush.msra.mxu0 %v185
    %589 = vmatmul.f32.gmra.mxu0 %v571
    %v590 = vpop.f32.mrf.mxu0
    %v591 = vadd.f32 0.0, %v590
    %592 = vdwg.mxu0
    %593 = vmatpush.msra.mxu0 %v246
    %594 = vmatpush.msra.mxu0 %v242
    %595 = vmatpush.msra.mxu0 %v238
    %596 = vmatpush.msra.mxu0 %v234
    %597 = vmatpush.msra.mxu0 %v230
    %598 = vmatpush.msra.mxu0 %v226
    %599 = vmatpush.msra.mxu0 %v222
    %600 = vmatpush.msra.mxu0 %v218
    %601 = vmatpush.msra.mxu0 %v214
    %602 = vmatpush.msra.mxu0 %v210
    %603 = vmatpush.msra.mxu0 %v206
    %604 = vmatpush.msra.mxu0 %v202
    %605 = vmatpush.msra.mxu0 %v198
    %606 = vmatpush.msra.mxu0 %v194
    %607 = vmatpush.msra.mxu0 %v190
    %608 = vmatpush.msra.mxu0 %v186
    %609 = vmatmul.f32.gmra.mxu0 %v571
    %v610 = vpop.f32.mrf.mxu0
    %v611 = vadd.f32 0.0, %v610
    %612 = vdwg.mxu0
    %613 = vmatpush.msra.mxu0 %v247
    %614 = vmatpush.msra.mxu0 %v243
    %615 = vmatpush.msra.mxu0 %v239
    %616 = vmatpush.msra.mxu0 %v235
    %617 = vmatpush.msra.mxu0 %v231
    %618 = vmatpush.msra.mxu0 %v227
    %619 = vmatpush.msra.mxu0 %v223
    %620 = vmatpush.msra.mxu0 %v219
    %621 = vmatpush.msra.mxu0 %v215
    %622 = vmatpush.msra.mxu0 %v211
    %623 = vmatpush.msra.mxu0 %v207
    %624 = vmatpush.msra.mxu0 %v203
    %625 = vmatpush.msra.mxu0 %v199
    %626 = vmatpush.msra.mxu0 %v195
    %627 = vmatpush.msra.mxu0 %v191
    %628 = vmatpush.msra.mxu0 %v187
    %629 = vmatmul.f32.gmra.mxu0 %v571
    %v630 = vpop.f32.mrf.mxu0
    %v631 = vadd.f32 0.0, %v630
    %632 = vdwg.mxu0
    %633 = vmatpush.msra.mxu0 %v248
    %634 = vmatpush.msra.mxu0 %v244
    %635 = vmatpush.msra.mxu0 %v240
    %636 = vmatpush.msra.mxu0 %v236
    %637 = vmatpush.msra.mxu0 %v232
    %638 = vmatpush.msra.mxu0 %v228
    %639 = vmatpush.msra.mxu0 %v224
    %640 = vmatpush.msra.mxu0 %v220
    %641 = vmatpush.msra.mxu0 %v216
    %642 = vmatpush.msra.mxu0 %v212
    %643 = vmatpush.msra.mxu0 %v208
    %644 = vmatpush.msra.mxu0 %v204
    %645 = vmatpush.msra.mxu0 %v200
    %646 = vmatpush.msra.mxu0 %v196
    %647 = vmatpush.msra.mxu0 %v192
    %648 = vmatpush.msra.mxu0 %v188
    %649 = vmatmul.f32.gmra.mxu0 %v571
    %v650 = vpop.f32.mrf.mxu0
    %v651 = vadd.f32 0.0, %v650
    %652 = vdwg.mxu0
    %v657 = vrot.slane %v591, 4
    %v658 = vrot.slane %v611, 4
    %v659 = vrot.slane %v631, 4
    %v660 = vrot.slane %v651, 4
    %v665 = vadd.f32 %v566, %v657
    %v666 = vadd.f32 %v567, %v658
    %v667 = vadd.f32 %v568, %v659
    %v668 = vadd.f32 %v569, %v660
    %v669 = vxor.u32 %v665, 2147483648
    %v670 = vmul.f32 %v669, 1.442695
    %v671 = vpow.pop %v670
    %v672 = vadd.f32 %v671, 1.0
    %v673 = vrcp.pop %v672
    %v674 = vmul.f32 %v672, %v673
    %v675 = vsub.f32 1.0, %v674
    %v676 = vmul.f32 %v673, %v675
    %v677 = vadd.f32 %v673, %v676
    %vm678 = vweird.f32 %v672
    %vm679 = vweird.f32 %v673
    %vm680 = vmor %vm678, %vm679
    %v681 = vsel %vm680, %v673, %v677
    %v682 = vand.u32 2147483647, %v672
    %vm683 = vcmp.eq.f32.partialorder %v682, 8.507059e+37
    %v684 = vand.u32 %v672, 2147483648
    %v685 = vor.u32 1.1754944e-38, %v684
    %v686 = vsel %vm683, %v685, %v681
    %v687 = vmul.f32 1.0, %v686
    %v688 = vxor.u32 %v666, 2147483648
    %v689 = vmul.f32 %v688, 1.442695
    %v690 = vpow.pop %v689
    %v691 = vadd.f32 %v690, 1.0
    %v692 = vrcp.pop %v691
    %v693 = vmul.f32 %v691, %v692
    %v694 = vsub.f32 1.0, %v693
    %v695 = vmul.f32 %v692, %v694
    %v696 = vadd.f32 %v692, %v695
    %vm697 = vweird.f32 %v691
    %vm698 = vweird.f32 %v692
    %vm699 = vmor %vm697, %vm698
    %v700 = vsel %vm699, %v692, %v696
    %v701 = vand.u32 2147483647, %v691
    %vm702 = vcmp.eq.f32.partialorder %v701, 8.507059e+37
    %v703 = vand.u32 %v691, 2147483648
    %v704 = vor.u32 1.1754944e-38, %v703
    %v705 = vsel %vm702, %v704, %v700
    %v706 = vmul.f32 1.0, %v705
    %v707 = vtanh.pop %v667
    %v708 = vxor.u32 %v668, 2147483648
    %v709 = vmul.f32 %v708, 1.442695
    %v710 = vpow.pop %v709
    %v711 = vadd.f32 %v710, 1.0
    %v712 = vrcp.pop %v711
    %v713 = vmul.f32 %v711, %v712
    %v714 = vsub.f32 1.0, %v713
    %v715 = vmul.f32 %v712, %v714
    %v716 = vadd.f32 %v712, %v715
    %vm717 = vweird.f32 %v711
    %vm718 = vweird.f32 %v712
    %vm719 = vmor %vm717, %vm718
    %v720 = vsel %vm719, %v712, %v716
    %v721 = vand.u32 2147483647, %v711
    %vm722 = vcmp.eq.f32.partialorder %v721, 8.507059e+37
    %v723 = vand.u32 %v711, 2147483648
    %v724 = vor.u32 1.1754944e-38, %v723
    %v725 = vsel %vm722, %v724, %v720
    %v726 = vmul.f32 1.0, %v725
    %v728 = vrot.slane %v563, 6
    %v730 = vmul.f32 %v706, %v728
    %v731 = vmul.f32 %v687, %v707
    %v732 = vadd.f32 %v730, %v731
    %v733 = vtanh.pop %v732
    %v734 = vmul.f32 %v726, %v733
    %v735 = vld [vmem:[#allocation2] sm:$0xc0]
    %v736 = vld [vmem:[#allocation2 + $0x8] sm:$0xc0]
    %v737 = vld [vmem:[#allocation2 + $0x10] sm:$0xc0]
    %v738 = vld [vmem:[#allocation2 + $0x18] sm:$0xc0]
    %v740 = vrot.slane %v734, 4
    %742 = vmatpush.msra.mxu0 %v245
    %743 = vmatpush.msra.mxu0 %v241
    %744 = vmatpush.msra.mxu0 %v237
    %745 = vmatpush.msra.mxu0 %v233
    %746 = vmatpush.msra.mxu0 %v229
    %747 = vmatpush.msra.mxu0 %v225
    %748 = vmatpush.msra.mxu0 %v221
    %749 = vmatpush.msra.mxu0 %v217
    %750 = vmatpush.msra.mxu0 %v213
    %751 = vmatpush.msra.mxu0 %v209
    %752 = vmatpush.msra.mxu0 %v205
    %753 = vmatpush.msra.mxu0 %v201
    %754 = vmatpush.msra.mxu0 %v197
    %755 = vmatpush.msra.mxu0 %v193
    %756 = vmatpush.msra.mxu0 %v189
    %757 = vmatpush.msra.mxu0 %v185
    %758 = vmatmul.f32.gmra.mxu0 %v740
    %v759 = vpop.f32.mrf.mxu0
    %v760 = vadd.f32 0.0, %v759
    %761 = vdwg.mxu0
    %762 = vmatpush.msra.mxu0 %v246
    %763 = vmatpush.msra.mxu0 %v242
    %764 = vmatpush.msra.mxu0 %v238
    %765 = vmatpush.msra.mxu0 %v234
    %766 = vmatpush.msra.mxu0 %v230
    %767 = vmatpush.msra.mxu0 %v226
    %768 = vmatpush.msra.mxu0 %v222
    %769 = vmatpush.msra.mxu0 %v218
    %770 = vmatpush.msra.mxu0 %v214
    %771 = vmatpush.msra.mxu0 %v210
    %772 = vmatpush.msra.mxu0 %v206
    %773 = vmatpush.msra.mxu0 %v202
    %774 = vmatpush.msra.mxu0 %v198
    %775 = vmatpush.msra.mxu0 %v194
    %776 = vmatpush.msra.mxu0 %v190
    %777 = vmatpush.msra.mxu0 %v186
    %778 = vmatmul.f32.gmra.mxu0 %v740
    %v779 = vpop.f32.mrf.mxu0
    %v780 = vadd.f32 0.0, %v779
    %781 = vdwg.mxu0
    %782 = vmatpush.msra.mxu0 %v247
    %783 = vmatpush.msra.mxu0 %v243
    %784 = vmatpush.msra.mxu0 %v239
    %785 = vmatpush.msra.mxu0 %v235
    %786 = vmatpush.msra.mxu0 %v231
    %787 = vmatpush.msra.mxu0 %v227
    %788 = vmatpush.msra.mxu0 %v223
    %789 = vmatpush.msra.mxu0 %v219
    %790 = vmatpush.msra.mxu0 %v215
    %791 = vmatpush.msra.mxu0 %v211
    %792 = vmatpush.msra.mxu0 %v207
    %793 = vmatpush.msra.mxu0 %v203
    %794 = vmatpush.msra.mxu0 %v199
    %795 = vmatpush.msra.mxu0 %v195
    %796 = vmatpush.msra.mxu0 %v191
    %797 = vmatpush.msra.mxu0 %v187
    %798 = vmatmul.f32.gmra.mxu0 %v740
    %v799 = vpop.f32.mrf.mxu0
    %v800 = vadd.f32 0.0, %v799
    %801 = vdwg.mxu0
    %802 = vmatpush.msra.mxu0 %v248
    %803 = vmatpush.msra.mxu0 %v244
    %804 = vmatpush.msra.mxu0 %v240
    %805 = vmatpush.msra.mxu0 %v236
    %806 = vmatpush.msra.mxu0 %v232
    %807 = vmatpush.msra.mxu0 %v228
    %808 = vmatpush.msra.mxu0 %v224
    %809 = vmatpush.msra.mxu0 %v220
    %810 = vmatpush.msra.mxu0 %v216
    %811 = vmatpush.msra.mxu0 %v212
    %812 = vmatpush.msra.mxu0 %v208
    %813 = vmatpush.msra.mxu0 %v204
    %814 = vmatpush.msra.mxu0 %v200
    %815 = vmatpush.msra.mxu0 %v196
    %816 = vmatpush.msra.mxu0 %v192
    %817 = vmatpush.msra.mxu0 %v188
    %818 = vmatmul.f32.gmra.mxu0 %v740
    %v819 = vpop.f32.mrf.mxu0
    %v820 = vadd.f32 0.0, %v819
    %821 = vdwg.mxu0
    %v826 = vrot.slane %v760, 2
    %v827 = vrot.slane %v780, 2
    %v828 = vrot.slane %v800, 2
    %v829 = vrot.slane %v820, 2
    %v834 = vadd.f32 %v735, %v826
    %v835 = vadd.f32 %v736, %v827
    %v836 = vadd.f32 %v737, %v828
    %v837 = vadd.f32 %v738, %v829
    %v838 = vxor.u32 %v834, 2147483648
    %v839 = vmul.f32 %v838, 1.442695
    %v840 = vpow.pop %v839
    %v841 = vadd.f32 %v840, 1.0
    %v842 = vrcp.pop %v841
    %v843 = vmul.f32 %v841, %v842
    %v844 = vsub.f32 1.0, %v843
    %v845 = vmul.f32 %v842, %v844
    %v846 = vadd.f32 %v842, %v845
    %vm847 = vweird.f32 %v841
    %vm848 = vweird.f32 %v842
    %vm849 = vmor %vm847, %vm848
    %v850 = vsel %vm849, %v842, %v846
    %v851 = vand.u32 2147483647, %v841
    %vm852 = vcmp.eq.f32.partialorder %v851, 8.507059e+37
    %v853 = vand.u32 %v841, 2147483648
    %v854 = vor.u32 1.1754944e-38, %v853
    %v855 = vsel %vm852, %v854, %v850
    %v856 = vmul.f32 1.0, %v855
    %v857 = vxor.u32 %v835, 2147483648
    %v858 = vmul.f32 %v857, 1.442695
    %v859 = vpow.pop %v858
    %v860 = vadd.f32 %v859, 1.0
    %v861 = vrcp.pop %v860
    %v862 = vmul.f32 %v860, %v861
    %v863 = vsub.f32 1.0, %v862
    %v864 = vmul.f32 %v861, %v863
    %v865 = vadd.f32 %v861, %v864
    %vm866 = vweird.f32 %v860
    %vm867 = vweird.f32 %v861
    %vm868 = vmor %vm866, %vm867
    %v869 = vsel %vm868, %v861, %v865
    %v870 = vand.u32 2147483647, %v860
    %vm871 = vcmp.eq.f32.partialorder %v870, 8.507059e+37
    %v872 = vand.u32 %v860, 2147483648
    %v873 = vor.u32 1.1754944e-38, %v872
    %v874 = vsel %vm871, %v873, %v869
    %v875 = vmul.f32 1.0, %v874
    %v876 = vtanh.pop %v836
    %v877 = vxor.u32 %v837, 2147483648
    %v878 = vmul.f32 %v877, 1.442695
    %v879 = vpow.pop %v878
    %v880 = vadd.f32 %v879, 1.0
    %v881 = vrcp.pop %v880
    %v882 = vmul.f32 %v880, %v881
    %v883 = vsub.f32 1.0, %v882
    %v884 = vmul.f32 %v881, %v883
    %v885 = vadd.f32 %v881, %v884
    %vm886 = vweird.f32 %v880
    %vm887 = vweird.f32 %v881
    %vm888 = vmor %vm886, %vm887
    %v889 = vsel %vm888, %v881, %v885
    %v890 = vand.u32 2147483647, %v880
    %vm891 = vcmp.eq.f32.partialorder %v890, 8.507059e+37
    %v892 = vand.u32 %v880, 2147483648
    %v893 = vor.u32 1.1754944e-38, %v892
    %v894 = vsel %vm891, %v893, %v889
    %v895 = vmul.f32 1.0, %v894
    %v897 = vrot.slane %v732, 6
    %v899 = vmul.f32 %v875, %v897
    %v900 = vmul.f32 %v856, %v876
    %v901 = vadd.f32 %v899, %v900
    %v902 = vtanh.pop %v901
    %v903 = vmul.f32 %v895, %v902
    %v904 = vld [vmem:[#allocation2 + $0x20] sm:$0x3]
    %v905 = vld [vmem:[#allocation2 + $0x28] sm:$0x3]
    %v906 = vld [vmem:[#allocation2 + $0x30] sm:$0x3]
    %v907 = vld [vmem:[#allocation2 + $0x38] sm:$0x3]
    %v909 = vrot.slane %v903, 6
    %911 = vmatpush.msra.mxu0 %v245
    %912 = vmatpush.msra.mxu0 %v241
    %913 = vmatpush.msra.mxu0 %v237
    %914 = vmatpush.msra.mxu0 %v233
    %915 = vmatpush.msra.mxu0 %v229
    %916 = vmatpush.msra.mxu0 %v225
    %917 = vmatpush.msra.mxu0 %v221
    %918 = vmatpush.msra.mxu0 %v217
    %919 = vmatpush.msra.mxu0 %v213
    %920 = vmatpush.msra.mxu0 %v209
    %921 = vmatpush.msra.mxu0 %v205
    %922 = vmatpush.msra.mxu0 %v201
    %923 = vmatpush.msra.mxu0 %v197
    %924 = vmatpush.msra.mxu0 %v193
    %925 = vmatpush.msra.mxu0 %v189
    %926 = vmatpush.msra.mxu0 %v185
    %927 = vmatmul.f32.gmra.mxu0 %v909
    %v928 = vpop.f32.mrf.mxu0
    %v929 = vadd.f32 0.0, %v928
    %930 = vdwg.mxu0
    %931 = vmatpush.msra.mxu0 %v246
    %932 = vmatpush.msra.mxu0 %v242
    %933 = vmatpush.msra.mxu0 %v238
    %934 = vmatpush.msra.mxu0 %v234
    %935 = vmatpush.msra.mxu0 %v230
    %936 = vmatpush.msra.mxu0 %v226
    %937 = vmatpush.msra.mxu0 %v222
    %938 = vmatpush.msra.mxu0 %v218
    %939 = vmatpush.msra.mxu0 %v214
    %940 = vmatpush.msra.mxu0 %v210
    %941 = vmatpush.msra.mxu0 %v206
    %942 = vmatpush.msra.mxu0 %v202
    %943 = vmatpush.msra.mxu0 %v198
    %944 = vmatpush.msra.mxu0 %v194
    %945 = vmatpush.msra.mxu0 %v190
    %946 = vmatpush.msra.mxu0 %v186
    %947 = vmatmul.f32.gmra.mxu0 %v909
    %v948 = vpop.f32.mrf.mxu0
    %v949 = vadd.f32 0.0, %v948
    %950 = vdwg.mxu0
    %951 = vmatpush.msra.mxu0 %v247
    %952 = vmatpush.msra.mxu0 %v243
    %953 = vmatpush.msra.mxu0 %v239
    %954 = vmatpush.msra.mxu0 %v235
    %955 = vmatpush.msra.mxu0 %v231
    %956 = vmatpush.msra.mxu0 %v227
    %957 = vmatpush.msra.mxu0 %v223
    %958 = vmatpush.msra.mxu0 %v219
    %959 = vmatpush.msra.mxu0 %v215
    %960 = vmatpush.msra.mxu0 %v211
    %961 = vmatpush.msra.mxu0 %v207
    %962 = vmatpush.msra.mxu0 %v203
    %963 = vmatpush.msra.mxu0 %v199
    %964 = vmatpush.msra.mxu0 %v195
    %965 = vmatpush.msra.mxu0 %v191
    %966 = vmatpush.msra.mxu0 %v187
    %967 = vmatmul.f32.gmra.mxu0 %v909
    %v968 = vpop.f32.mrf.mxu0
    %v969 = vadd.f32 0.0, %v968
    %970 = vdwg.mxu0
    %971 = vmatpush.msra.mxu0 %v248
    %972 = vmatpush.msra.mxu0 %v244
    %973 = vmatpush.msra.mxu0 %v240
    %974 = vmatpush.msra.mxu0 %v236
    %975 = vmatpush.msra.mxu0 %v232
    %976 = vmatpush.msra.mxu0 %v228
    %977 = vmatpush.msra.mxu0 %v224
    %978 = vmatpush.msra.mxu0 %v220
    %979 = vmatpush.msra.mxu0 %v216
    %980 = vmatpush.msra.mxu0 %v212
    %981 = vmatpush.msra.mxu0 %v208
    %982 = vmatpush.msra.mxu0 %v204
    %983 = vmatpush.msra.mxu0 %v200
    %984 = vmatpush.msra.mxu0 %v196
    %985 = vmatpush.msra.mxu0 %v192
    %986 = vmatpush.msra.mxu0 %v188
    %987 = vmatmul.f32.gmra.mxu0 %v909
    %v988 = vpop.f32.mrf.mxu0
    %v989 = vadd.f32 0.0, %v988
    %990 = vdwg.mxu0
    %v991 = vadd.f32 %v904, %v929
    %v992 = vadd.f32 %v905, %v949
    %v993 = vadd.f32 %v906, %v969
    %v994 = vadd.f32 %v907, %v989
    %v995 = vxor.u32 %v991, 2147483648
    %v996 = vmul.f32 %v995, 1.442695
    %v997 = vpow.pop %v996
    %v998 = vadd.f32 %v997, 1.0
    %v999 = vrcp.pop %v998
    %v1000 = vmul.f32 %v998, %v999
    %v1001 = vsub.f32 1.0, %v1000
    %v1002 = vmul.f32 %v999, %v1001
    %v1003 = vadd.f32 %v999, %v1002
    %vm1004 = vweird.f32 %v998
    %vm1005 = vweird.f32 %v999
    %vm1006 = vmor %vm1004, %vm1005
    %v1007 = vsel %vm1006, %v999, %v1003
    %v1008 = vand.u32 2147483647, %v998
    %vm1009 = vcmp.eq.f32.partialorder %v1008, 8.507059e+37
    %v1010 = vand.u32 %v998, 2147483648
    %v1011 = vor.u32 1.1754944e-38, %v1010
    %v1012 = vsel %vm1009, %v1011, %v1007
    %v1013 = vmul.f32 1.0, %v1012
    %v1014 = vxor.u32 %v992, 2147483648
    %v1015 = vmul.f32 %v1014, 1.442695
    %v1016 = vpow.pop %v1015
    %v1017 = vadd.f32 %v1016, 1.0
    %v1018 = vrcp.pop %v1017
    %v1019 = vmul.f32 %v1017, %v1018
    %v1020 = vsub.f32 1.0, %v1019
    %v1021 = vmul.f32 %v1018, %v1020
    %v1022 = vadd.f32 %v1018, %v1021
    %vm1023 = vweird.f32 %v1017
    %vm1024 = vweird.f32 %v1018
    %vm1025 = vmor %vm1023, %vm1024
    %v1026 = vsel %vm1025, %v1018, %v1022
    %v1027 = vand.u32 2147483647, %v1017
    %vm1028 = vcmp.eq.f32.partialorder %v1027, 8.507059e+37
    %v1029 = vand.u32 %v1017, 2147483648
    %v1030 = vor.u32 1.1754944e-38, %v1029
    %v1031 = vsel %vm1028, %v1030, %v1026
    %v1032 = vmul.f32 1.0, %v1031
    %v1033 = vtanh.pop %v993
    %v1034 = vxor.u32 %v994, 2147483648
    %v1035 = vmul.f32 %v1034, 1.442695
    %v1036 = vpow.pop %v1035
    %v1037 = vadd.f32 %v1036, 1.0
    %v1038 = vrcp.pop %v1037
    %v1039 = vmul.f32 %v1037, %v1038
    %v1040 = vsub.f32 1.0, %v1039
    %v1041 = vmul.f32 %v1038, %v1040
    %v1042 = vadd.f32 %v1038, %v1041
    %vm1043 = vweird.f32 %v1037
    %vm1044 = vweird.f32 %v1038
    %vm1045 = vmor %vm1043, %vm1044
    %v1046 = vsel %vm1045, %v1038, %v1042
    %v1047 = vand.u32 2147483647, %v1037
    %vm1048 = vcmp.eq.f32.partialorder %v1047, 8.507059e+37
    %v1049 = vand.u32 %v1037, 2147483648
    %v1050 = vor.u32 1.1754944e-38, %v1049
    %v1051 = vsel %vm1048, %v1050, %v1046
    %v1052 = vmul.f32 1.0, %v1051
    %v1054 = vrot.slane %v901, 6
    %v1056 = vmul.f32 %v1032, %v1054
    %v1057 = vmul.f32 %v1013, %v1033
    %v1058 = vadd.f32 %v1056, %v1057
    %v1059 = vtanh.pop %v1058
    %v1060 = vmul.f32 %v1052, %v1059
    %v1061 = vld [vmem:[#allocation2 + $0x20] sm:$0xc]
    %v1062 = vld [vmem:[#allocation2 + $0x28] sm:$0xc]
    %v1063 = vld [vmem:[#allocation2 + $0x30] sm:$0xc]
    %v1064 = vld [vmem:[#allocation2 + $0x38] sm:$0xc]
    %1065 = vmatpush.msra.mxu0 %v245
    %1066 = vmatpush.msra.mxu0 %v241
    %1067 = vmatpush.msra.mxu0 %v237
    %1068 = vmatpush.msra.mxu0 %v233
    %1069 = vmatpush.msra.mxu0 %v229
    %1070 = vmatpush.msra.mxu0 %v225
    %1071 = vmatpush.msra.mxu0 %v221
    %1072 = vmatpush.msra.mxu0 %v217
    %1073 = vmatpush.msra.mxu0 %v213
    %1074 = vmatpush.msra.mxu0 %v209
    %1075 = vmatpush.msra.mxu0 %v205
    %1076 = vmatpush.msra.mxu0 %v201
    %1077 = vmatpush.msra.mxu0 %v197
    %1078 = vmatpush.msra.mxu0 %v193
    %1079 = vmatpush.msra.mxu0 %v189
    %1080 = vmatpush.msra.mxu0 %v185
    %1081 = vmatmul.f32.gmra.mxu0 %v1060
    %v1082 = vpop.f32.mrf.mxu0
    %v1083 = vadd.f32 0.0, %v1082
    %1084 = vdwg.mxu0
    %1085 = vmatpush.msra.mxu0 %v246
    %1086 = vmatpush.msra.mxu0 %v242
    %1087 = vmatpush.msra.mxu0 %v238
    %1088 = vmatpush.msra.mxu0 %v234
    %1089 = vmatpush.msra.mxu0 %v230
    %1090 = vmatpush.msra.mxu0 %v226
    %1091 = vmatpush.msra.mxu0 %v222
    %1092 = vmatpush.msra.mxu0 %v218
    %1093 = vmatpush.msra.mxu0 %v214
    %1094 = vmatpush.msra.mxu0 %v210
    %1095 = vmatpush.msra.mxu0 %v206
    %1096 = vmatpush.msra.mxu0 %v202
    %1097 = vmatpush.msra.mxu0 %v198
    %1098 = vmatpush.msra.mxu0 %v194
    %1099 = vmatpush.msra.mxu0 %v190
    %1100 = vmatpush.msra.mxu0 %v186
    %1101 = vmatmul.f32.gmra.mxu0 %v1060
    %v1102 = vpop.f32.mrf.mxu0
    %v1103 = vadd.f32 0.0, %v1102
    %1104 = vdwg.mxu0
    %1105 = vmatpush.msra.mxu0 %v247
    %1106 = vmatpush.msra.mxu0 %v243
    %1107 = vmatpush.msra.mxu0 %v239
    %1108 = vmatpush.msra.mxu0 %v235
    %1109 = vmatpush.msra.mxu0 %v231
    %1110 = vmatpush.msra.mxu0 %v227
    %1111 = vmatpush.msra.mxu0 %v223
    %1112 = vmatpush.msra.mxu0 %v219
    %1113 = vmatpush.msra.mxu0 %v215
    %1114 = vmatpush.msra.mxu0 %v211
    %1115 = vmatpush.msra.mxu0 %v207
    %1116 = vmatpush.msra.mxu0 %v203
    %1117 = vmatpush.msra.mxu0 %v199
    %1118 = vmatpush.msra.mxu0 %v195
    %1119 = vmatpush.msra.mxu0 %v191
    %1120 = vmatpush.msra.mxu0 %v187
    %1121 = vmatmul.f32.gmra.mxu0 %v1060
    %v1122 = vpop.f32.mrf.mxu0
    %v1123 = vadd.f32 0.0, %v1122
    %1124 = vdwg.mxu0
    %1125 = vmatpush.msra.mxu0 %v248
    %1126 = vmatpush.msra.mxu0 %v244
    %1127 = vmatpush.msra.mxu0 %v240
    %1128 = vmatpush.msra.mxu0 %v236
    %1129 = vmatpush.msra.mxu0 %v232
    %1130 = vmatpush.msra.mxu0 %v228
    %1131 = vmatpush.msra.mxu0 %v224
    %1132 = vmatpush.msra.mxu0 %v220
    %1133 = vmatpush.msra.mxu0 %v216
    %1134 = vmatpush.msra.mxu0 %v212
    %1135 = vmatpush.msra.mxu0 %v208
    %1136 = vmatpush.msra.mxu0 %v204
    %1137 = vmatpush.msra.mxu0 %v200
    %1138 = vmatpush.msra.mxu0 %v196
    %1139 = vmatpush.msra.mxu0 %v192
    %1140 = vmatpush.msra.mxu0 %v188
    %1141 = vmatmul.f32.gmra.mxu0 %v1060
    %v1142 = vpop.f32.mrf.mxu0
    %v1143 = vadd.f32 0.0, %v1142
    %1144 = vdwg.mxu0
    %v1149 = vrot.slane %v1083, 6
    %v1150 = vrot.slane %v1103, 6
    %v1151 = vrot.slane %v1123, 6
    %v1152 = vrot.slane %v1143, 6
    %v1157 = vadd.f32 %v1061, %v1149
    %v1158 = vadd.f32 %v1062, %v1150
    %v1159 = vadd.f32 %v1063, %v1151
    %v1160 = vadd.f32 %v1064, %v1152
    %v1161 = vxor.u32 %v1157, 2147483648
    %v1162 = vmul.f32 %v1161, 1.442695
    %v1163 = vpow.pop %v1162
    %v1164 = vadd.f32 %v1163, 1.0
    %v1165 = vrcp.pop %v1164
    %v1166 = vmul.f32 %v1164, %v1165
    %v1167 = vsub.f32 1.0, %v1166
    %v1168 = vmul.f32 %v1165, %v1167
    %v1169 = vadd.f32 %v1165, %v1168
    %vm1170 = vweird.f32 %v1164
    %vm1171 = vweird.f32 %v1165
    %vm1172 = vmor %vm1170, %vm1171
    %v1173 = vsel %vm1172, %v1165, %v1169
    %v1174 = vand.u32 2147483647, %v1164
    %vm1175 = vcmp.eq.f32.partialorder %v1174, 8.507059e+37
    %v1176 = vand.u32 %v1164, 2147483648
    %v1177 = vor.u32 1.1754944e-38, %v1176
    %v1178 = vsel %vm1175, %v1177, %v1173
    %v1179 = vmul.f32 1.0, %v1178
    %v1180 = vxor.u32 %v1158, 2147483648
    %v1181 = vmul.f32 %v1180, 1.442695
    %v1182 = vpow.pop %v1181
    %v1183 = vadd.f32 %v1182, 1.0
    %v1184 = vrcp.pop %v1183
    %v1185 = vmul.f32 %v1183, %v1184
    %v1186 = vsub.f32 1.0, %v1185
    %v1187 = vmul.f32 %v1184, %v1186
    %v1188 = vadd.f32 %v1184, %v1187
    %vm1189 = vweird.f32 %v1183
    %vm1190 = vweird.f32 %v1184
    %vm1191 = vmor %vm1189, %vm1190
    %v1192 = vsel %vm1191, %v1184, %v1188
    %v1193 = vand.u32 2147483647, %v1183
    %vm1194 = vcmp.eq.f32.partialorder %v1193, 8.507059e+37
    %v1195 = vand.u32 %v1183, 2147483648
    %v1196 = vor.u32 1.1754944e-38, %v1195
    %v1197 = vsel %vm1194, %v1196, %v1192
    %v1198 = vmul.f32 1.0, %v1197
    %v1199 = vtanh.pop %v1159
    %v1200 = vxor.u32 %v1160, 2147483648
    %v1201 = vmul.f32 %v1200, 1.442695
    %v1202 = vpow.pop %v1201
    %v1203 = vadd.f32 %v1202, 1.0
    %v1204 = vrcp.pop %v1203
    %v1205 = vmul.f32 %v1203, %v1204
    %v1206 = vsub.f32 1.0, %v1205
    %v1207 = vmul.f32 %v1204, %v1206
    %v1208 = vadd.f32 %v1204, %v1207
    %vm1209 = vweird.f32 %v1203
    %vm1210 = vweird.f32 %v1204
    %vm1211 = vmor %vm1209, %vm1210
    %v1212 = vsel %vm1211, %v1204, %v1208
    %v1213 = vand.u32 2147483647, %v1203
    %vm1214 = vcmp.eq.f32.partialorder %v1213, 8.507059e+37
    %v1215 = vand.u32 %v1203, 2147483648
    %v1216 = vor.u32 1.1754944e-38, %v1215
    %v1217 = vsel %vm1214, %v1216, %v1212
    %v1218 = vmul.f32 1.0, %v1217
    %v1220 = vrot.slane %v1058, 6
    %v1222 = vmul.f32 %v1198, %v1220
    %v1223 = vmul.f32 %v1179, %v1199
    %v1224 = vadd.f32 %v1222, %v1223
    %v1225 = vtanh.pop %v1224
    %v1226 = vmul.f32 %v1218, %v1225
    %v1227 = vld [vmem:[#allocation2 + $0x20] sm:$0x30]
    %v1228 = vld [vmem:[#allocation2 + $0x28] sm:$0x30]
    %v1229 = vld [vmem:[#allocation2 + $0x30] sm:$0x30]
    %v1230 = vld [vmem:[#allocation2 + $0x38] sm:$0x30]
    %v1232 = vrot.slane %v1226, 2
    %1234 = vmatpush.msra.mxu0 %v245
    %1235 = vmatpush.msra.mxu0 %v241
    %1236 = vmatpush.msra.mxu0 %v237
    %1237 = vmatpush.msra.mxu0 %v233
    %1238 = vmatpush.msra.mxu0 %v229
    %1239 = vmatpush.msra.mxu0 %v225
    %1240 = vmatpush.msra.mxu0 %v221
    %1241 = vmatpush.msra.mxu0 %v217
    %1242 = vmatpush.msra.mxu0 %v213
    %1243 = vmatpush.msra.mxu0 %v209
    %1244 = vmatpush.msra.mxu0 %v205
    %1245 = vmatpush.msra.mxu0 %v201
    %1246 = vmatpush.msra.mxu0 %v197
    %1247 = vmatpush.msra.mxu0 %v193
    %1248 = vmatpush.msra.mxu0 %v189
    %1249 = vmatpush.msra.mxu0 %v185
    %1250 = vmatmul.f32.gmra.mxu0 %v1232
    %v1251 = vpop.f32.mrf.mxu0
    %v1252 = vadd.f32 0.0, %v1251
    %1253 = vdwg.mxu0
    %1254 = vmatpush.msra.mxu0 %v246
    %1255 = vmatpush.msra.mxu0 %v242
    %1256 = vmatpush.msra.mxu0 %v238
    %1257 = vmatpush.msra.mxu0 %v234
    %1258 = vmatpush.msra.mxu0 %v230
    %1259 = vmatpush.msra.mxu0 %v226
    %1260 = vmatpush.msra.mxu0 %v222
    %1261 = vmatpush.msra.mxu0 %v218
    %1262 = vmatpush.msra.mxu0 %v214
    %1263 = vmatpush.msra.mxu0 %v210
    %1264 = vmatpush.msra.mxu0 %v206
    %1265 = vmatpush.msra.mxu0 %v202
    %1266 = vmatpush.msra.mxu0 %v198
    %1267 = vmatpush.msra.mxu0 %v194
    %1268 = vmatpush.msra.mxu0 %v190
    %1269 = vmatpush.msra.mxu0 %v186
    %1270 = vmatmul.f32.gmra.mxu0 %v1232
    %v1271 = vpop.f32.mrf.mxu0
    %v1272 = vadd.f32 0.0, %v1271
    %1273 = vdwg.mxu0
    %1274 = vmatpush.msra.mxu0 %v247
    %1275 = vmatpush.msra.mxu0 %v243
    %1276 = vmatpush.msra.mxu0 %v239
    %1277 = vmatpush.msra.mxu0 %v235
    %1278 = vmatpush.msra.mxu0 %v231
    %1279 = vmatpush.msra.mxu0 %v227
    %1280 = vmatpush.msra.mxu0 %v223
    %1281 = vmatpush.msra.mxu0 %v219
    %1282 = vmatpush.msra.mxu0 %v215
    %1283 = vmatpush.msra.mxu0 %v211
    %1284 = vmatpush.msra.mxu0 %v207
    %1285 = vmatpush.msra.mxu0 %v203
    %1286 = vmatpush.msra.mxu0 %v199
    %1287 = vmatpush.msra.mxu0 %v195
    %1288 = vmatpush.msra.mxu0 %v191
    %1289 = vmatpush.msra.mxu0 %v187
    %1290 = vmatmul.f32.gmra.mxu0 %v1232
    %v1291 = vpop.f32.mrf.mxu0
    %v1292 = vadd.f32 0.0, %v1291
    %1293 = vdwg.mxu0
    %1294 = vmatpush.msra.mxu0 %v248
    %1295 = vmatpush.msra.mxu0 %v244
    %1296 = vmatpush.msra.mxu0 %v240
    %1297 = vmatpush.msra.mxu0 %v236
    %1298 = vmatpush.msra.mxu0 %v232
    %1299 = vmatpush.msra.mxu0 %v228
    %1300 = vmatpush.msra.mxu0 %v224
    %1301 = vmatpush.msra.mxu0 %v220
    %1302 = vmatpush.msra.mxu0 %v216
    %1303 = vmatpush.msra.mxu0 %v212
    %1304 = vmatpush.msra.mxu0 %v208
    %1305 = vmatpush.msra.mxu0 %v204
    %1306 = vmatpush.msra.mxu0 %v200
    %1307 = vmatpush.msra.mxu0 %v196
    %1308 = vmatpush.msra.mxu0 %v192
    %1309 = vmatpush.msra.mxu0 %v188
    %1310 = vmatmul.f32.gmra.mxu0 %v1232
    %v1311 = vpop.f32.mrf.mxu0
    %v1312 = vadd.f32 0.0, %v1311
    %1313 = vdwg.mxu0
    %v1318 = vrot.slane %v1252, 4
    %v1319 = vrot.slane %v1272, 4
    %v1320 = vrot.slane %v1292, 4
    %v1321 = vrot.slane %v1312, 4
    %v1326 = vadd.f32 %v1227, %v1318
    %v1327 = vadd.f32 %v1228, %v1319
    %v1328 = vadd.f32 %v1229, %v1320
    %v1329 = vadd.f32 %v1230, %v1321
    %v1330 = vxor.u32 %v1326, 2147483648
    %v1331 = vmul.f32 %v1330, 1.442695
    %v1332 = vpow.pop %v1331
    %v1333 = vadd.f32 %v1332, 1.0
    %v1334 = vrcp.pop %v1333
    %v1335 = vmul.f32 %v1333, %v1334
    %v1336 = vsub.f32 1.0, %v1335
    %v1337 = vmul.f32 %v1334, %v1336
    %v1338 = vadd.f32 %v1334, %v1337
    %vm1339 = vweird.f32 %v1333
    %vm1340 = vweird.f32 %v1334
    %vm1341 = vmor %vm1339, %vm1340
    %v1342 = vsel %vm1341, %v1334, %v1338
    %v1343 = vand.u32 2147483647, %v1333
    %vm1344 = vcmp.eq.f32.partialorder %v1343, 8.507059e+37
    %v1345 = vand.u32 %v1333, 2147483648
    %v1346 = vor.u32 1.1754944e-38, %v1345
    %v1347 = vsel %vm1344, %v1346, %v1342
    %v1348 = vmul.f32 1.0, %v1347
    %v1349 = vxor.u32 %v1327, 2147483648
    %v1350 = vmul.f32 %v1349, 1.442695
    %v1351 = vpow.pop %v1350
    %v1352 = vadd.f32 %v1351, 1.0
    %v1353 = vrcp.pop %v1352
    %v1354 = vmul.f32 %v1352, %v1353
    %v1355 = vsub.f32 1.0, %v1354
    %v1356 = vmul.f32 %v1353, %v1355
    %v1357 = vadd.f32 %v1353, %v1356
    %vm1358 = vweird.f32 %v1352
    %vm1359 = vweird.f32 %v1353
    %vm1360 = vmor %vm1358, %vm1359
    %v1361 = vsel %vm1360, %v1353, %v1357
    %v1362 = vand.u32 2147483647, %v1352
    %vm1363 = vcmp.eq.f32.partialorder %v1362, 8.507059e+37
    %v1364 = vand.u32 %v1352, 2147483648
    %v1365 = vor.u32 1.1754944e-38, %v1364
    %v1366 = vsel %vm1363, %v1365, %v1361
    %v1367 = vmul.f32 1.0, %v1366
    %v1368 = vtanh.pop %v1328
    %v1369 = vxor.u32 %v1329, 2147483648
    %v1370 = vmul.f32 %v1369, 1.442695
    %v1371 = vpow.pop %v1370
    %v1372 = vadd.f32 %v1371, 1.0
    %v1373 = vrcp.pop %v1372
    %v1374 = vmul.f32 %v1372, %v1373
    %v1375 = vsub.f32 1.0, %v1374
    %v1376 = vmul.f32 %v1373, %v1375
    %v1377 = vadd.f32 %v1373, %v1376
    %vm1378 = vweird.f32 %v1372
    %vm1379 = vweird.f32 %v1373
    %vm1380 = vmor %vm1378, %vm1379
    %v1381 = vsel %vm1380, %v1373, %v1377
    %v1382 = vand.u32 2147483647, %v1372
    %vm1383 = vcmp.eq.f32.partialorder %v1382, 8.507059e+37
    %v1384 = vand.u32 %v1372, 2147483648
    %v1385 = vor.u32 1.1754944e-38, %v1384
    %v1386 = vsel %vm1383, %v1385, %v1381
    %v1387 = vmul.f32 1.0, %v1386
    %v1389 = vrot.slane %v1224, 6
    %v1391 = vmul.f32 %v1367, %v1389
    %v1392 = vmul.f32 %v1348, %v1368
    %v1393 = vadd.f32 %v1391, %v1392
    %v1394 = vtanh.pop %v1393
    %v1395 = vmul.f32 %v1387, %v1394
    %v1396 = vld [vmem:[#allocation2 + $0x20] sm:$0xc0]
    %v1397 = vld [vmem:[#allocation2 + $0x28] sm:$0xc0]
    %v1398 = vld [vmem:[#allocation2 + $0x30] sm:$0xc0]
    %v1399 = vld [vmem:[#allocation2 + $0x38] sm:$0xc0]
    %v1401 = vrot.slane %v1395, 4
    %1403 = vmatpush.msra.mxu0 %v245
    %1404 = vmatpush.msra.mxu0 %v241
    %1405 = vmatpush.msra.mxu0 %v237
    %1406 = vmatpush.msra.mxu0 %v233
    %1407 = vmatpush.msra.mxu0 %v229
    %1408 = vmatpush.msra.mxu0 %v225
    %1409 = vmatpush.msra.mxu0 %v221
    %1410 = vmatpush.msra.mxu0 %v217
    %1411 = vmatpush.msra.mxu0 %v213
    %1412 = vmatpush.msra.mxu0 %v209
    %1413 = vmatpush.msra.mxu0 %v205
    %1414 = vmatpush.msra.mxu0 %v201
    %1415 = vmatpush.msra.mxu0 %v197
    %1416 = vmatpush.msra.mxu0 %v193
    %1417 = vmatpush.msra.mxu0 %v189
    %1418 = vmatpush.msra.mxu0 %v185
    %1419 = vmatmul.f32.gmra.mxu0 %v1401
    %v1420 = vpop.f32.mrf.mxu0
    %v1421 = vadd.f32 0.0, %v1420
    %1422 = vdwg.mxu0
    %1423 = vmatpush.msra.mxu0 %v246
    %1424 = vmatpush.msra.mxu0 %v242
    %1425 = vmatpush.msra.mxu0 %v238
    %1426 = vmatpush.msra.mxu0 %v234
    %1427 = vmatpush.msra.mxu0 %v230
    %1428 = vmatpush.msra.mxu0 %v226
    %1429 = vmatpush.msra.mxu0 %v222
    %1430 = vmatpush.msra.mxu0 %v218
    %1431 = vmatpush.msra.mxu0 %v214
    %1432 = vmatpush.msra.mxu0 %v210
    %1433 = vmatpush.msra.mxu0 %v206
    %1434 = vmatpush.msra.mxu0 %v202
    %1435 = vmatpush.msra.mxu0 %v198
    %1436 = vmatpush.msra.mxu0 %v194
    %1437 = vmatpush.msra.mxu0 %v190
    %1438 = vmatpush.msra.mxu0 %v186
    %1439 = vmatmul.f32.gmra.mxu0 %v1401
    %v1440 = vpop.f32.mrf.mxu0
    %v1441 = vadd.f32 0.0, %v1440
    %1442 = vdwg.mxu0
    %1443 = vmatpush.msra.mxu0 %v247
    %1444 = vmatpush.msra.mxu0 %v243
    %1445 = vmatpush.msra.mxu0 %v239
    %1446 = vmatpush.msra.mxu0 %v235
    %1447 = vmatpush.msra.mxu0 %v231
    %1448 = vmatpush.msra.mxu0 %v227
    %1449 = vmatpush.msra.mxu0 %v223
    %1450 = vmatpush.msra.mxu0 %v219
    %1451 = vmatpush.msra.mxu0 %v215
    %1452 = vmatpush.msra.mxu0 %v211
    %1453 = vmatpush.msra.mxu0 %v207
    %1454 = vmatpush.msra.mxu0 %v203
    %1455 = vmatpush.msra.mxu0 %v199
    %1456 = vmatpush.msra.mxu0 %v195
    %1457 = vmatpush.msra.mxu0 %v191
    %1458 = vmatpush.msra.mxu0 %v187
    %1459 = vmatmul.f32.gmra.mxu0 %v1401
    %v1460 = vpop.f32.mrf.mxu0
    %v1461 = vadd.f32 0.0, %v1460
    %1462 = vdwg.mxu0
    %1463 = vmatpush.msra.mxu0 %v248
    %1464 = vmatpush.msra.mxu0 %v244
    %1465 = vmatpush.msra.mxu0 %v240
    %1466 = vmatpush.msra.mxu0 %v236
    %1467 = vmatpush.msra.mxu0 %v232
    %1468 = vmatpush.msra.mxu0 %v228
    %1469 = vmatpush.msra.mxu0 %v224
    %1470 = vmatpush.msra.mxu0 %v220
    %1471 = vmatpush.msra.mxu0 %v216
    %1472 = vmatpush.msra.mxu0 %v212
    %1473 = vmatpush.msra.mxu0 %v208
    %1474 = vmatpush.msra.mxu0 %v204
    %1475 = vmatpush.msra.mxu0 %v200
    %1476 = vmatpush.msra.mxu0 %v196
    %1477 = vmatpush.msra.mxu0 %v192
    %1478 = vmatpush.msra.mxu0 %v188
    %1479 = vmatmul.f32.gmra.mxu0 %v1401
    %v1480 = vpop.f32.mrf.mxu0
    %v1481 = vadd.f32 0.0, %v1480
    %1482 = vdwg.mxu0
    %v1487 = vrot.slane %v1421, 2
    %v1488 = vrot.slane %v1441, 2
    %v1489 = vrot.slane %v1461, 2
    %v1490 = vrot.slane %v1481, 2
    %v1495 = vadd.f32 %v1396, %v1487
    %v1496 = vadd.f32 %v1397, %v1488
    %v1497 = vadd.f32 %v1398, %v1489
    %v1498 = vadd.f32 %v1399, %v1490
    %v1499 = vxor.u32 %v1495, 2147483648
    %v1500 = vmul.f32 %v1499, 1.442695
    %v1501 = vpow.pop %v1500
    %v1502 = vadd.f32 %v1501, 1.0
    %v1503 = vrcp.pop %v1502
    %v1504 = vmul.f32 %v1502, %v1503
    %v1505 = vsub.f32 1.0, %v1504
    %v1506 = vmul.f32 %v1503, %v1505
    %v1507 = vadd.f32 %v1503, %v1506
    %vm1508 = vweird.f32 %v1502
    %vm1509 = vweird.f32 %v1503
    %vm1510 = vmor %vm1508, %vm1509
    %v1511 = vsel %vm1510, %v1503, %v1507
    %v1512 = vand.u32 2147483647, %v1502
    %vm1513 = vcmp.eq.f32.partialorder %v1512, 8.507059e+37
    %v1514 = vand.u32 %v1502, 2147483648
    %v1515 = vor.u32 1.1754944e-38, %v1514
    %v1516 = vsel %vm1513, %v1515, %v1511
    %v1517 = vmul.f32 1.0, %v1516
    %v1518 = vxor.u32 %v1496, 2147483648
    %v1519 = vmul.f32 %v1518, 1.442695
    %v1520 = vpow.pop %v1519
    %v1521 = vadd.f32 %v1520, 1.0
    %v1522 = vrcp.pop %v1521
    %v1523 = vmul.f32 %v1521, %v1522
    %v1524 = vsub.f32 1.0, %v1523
    %v1525 = vmul.f32 %v1522, %v1524
    %v1526 = vadd.f32 %v1522, %v1525
    %vm1527 = vweird.f32 %v1521
    %vm1528 = vweird.f32 %v1522
    %vm1529 = vmor %vm1527, %vm1528
    %v1530 = vsel %vm1529, %v1522, %v1526
    %v1531 = vand.u32 2147483647, %v1521
    %vm1532 = vcmp.eq.f32.partialorder %v1531, 8.507059e+37
    %v1533 = vand.u32 %v1521, 2147483648
    %v1534 = vor.u32 1.1754944e-38, %v1533
    %v1535 = vsel %vm1532, %v1534, %v1530
    %v1536 = vmul.f32 1.0, %v1535
    %v1537 = vtanh.pop %v1497
    %v1538 = vxor.u32 %v1498, 2147483648
    %v1539 = vmul.f32 %v1538, 1.442695
    %v1540 = vpow.pop %v1539
    %v1541 = vadd.f32 %v1540, 1.0
    %v1542 = vrcp.pop %v1541
    %v1543 = vmul.f32 %v1541, %v1542
    %v1544 = vsub.f32 1.0, %v1543
    %v1545 = vmul.f32 %v1542, %v1544
    %v1546 = vadd.f32 %v1542, %v1545
    %vm1547 = vweird.f32 %v1541
    %vm1548 = vweird.f32 %v1542
    %vm1549 = vmor %vm1547, %vm1548
    %v1550 = vsel %vm1549, %v1542, %v1546
    %v1551 = vand.u32 2147483647, %v1541
    %vm1552 = vcmp.eq.f32.partialorder %v1551, 8.507059e+37
    %v1553 = vand.u32 %v1541, 2147483648
    %v1554 = vor.u32 1.1754944e-38, %v1553
    %v1555 = vsel %vm1552, %v1554, %v1550
    %v1556 = vmul.f32 1.0, %v1555
    %v1558 = vrot.slane %v1393, 6
    %v1560 = vmul.f32 %v1536, %v1558
    %v1561 = vmul.f32 %v1517, %v1537
    %v1562 = vadd.f32 %v1560, %v1561
    %v1563 = vtanh.pop %v1562
    %v1564 = vmul.f32 %v1556, %v1563
    %1565 = vst [vmem:[#allocation7 - $0x6] sm:$0xc0] %v1564
    %1566 = vst [vmem:[#allocation8 - $0x6] sm:$0xc0] %v1562
    %v1567 = vld [vmem:[%s5] sm:$0xff]
    %v1568 = vld [vmem:[%s5 + $0x8] sm:$0xff]
    %v1569 = vld [vmem:[%s5 + $0x10] sm:$0xff]
    %v1570 = vld [vmem:[%s5 + $0x18] sm:$0xff]
    %v1571 = vld [vmem:[%s5 + $0x20] sm:$0xff]
    %v1572 = vld [vmem:[%s5 + $0x28] sm:$0xff]
    %v1573 = vld [vmem:[%s5 + $0x30] sm:$0xff]
    %v1574 = vld [vmem:[%s5 + $0x38] sm:$0xff]
    %v1575 = vld [vmem:[%s5 + $0x40] sm:$0xff]
    %v1576 = vld [vmem:[%s5 + $0x48] sm:$0xff]
    %v1577 = vld [vmem:[%s5 + $0x50] sm:$0xff]
    %v1578 = vld [vmem:[%s5 + $0x58] sm:$0xff]
    %v1579 = vld [vmem:[%s5 + $0x60] sm:$0xff]
    %v1580 = vld [vmem:[%s5 + $0x68] sm:$0xff]
    %v1581 = vld [vmem:[%s5 + $0x70] sm:$0xff]
    %v1582 = vld [vmem:[%s5 + $0x78] sm:$0xff]
    %v1583 = vld [vmem:[%s1] sm:$0x3]
    %v1584 = vld [vmem:[%s6] sm:$0xff]
    %vm1585 = vcmask 64512
    %v1587 = vsel %vm1585, %v1583, 0
    %1589 = vmatpush.msra.mxu0 0.0
    %1590 = vmatpush.msra.mxu0 0.0
    %1591 = vmatpush.msra.mxu0 0.0
    %1592 = vmatpush.msra.mxu0 0.0
    %1593 = vmatpush.msra.mxu0 0.0
    %1594 = vmatpush.msra.mxu0 0.0
    %1595 = vmatpush.msra.mxu0 0.0
    %1596 = vmatpush.msra.mxu0 0.0
    %1597 = vmatpush.msra.mxu0 0.0
    %1598 = vmatpush.msra.mxu0 0.0
    %1599 = vmatpush.msra.mxu0 0.0
    %1600 = vmatpush.msra.mxu0 0.0
    %1601 = vmatpush.msra.mxu0 0.0
    %1602 = vmatpush.msra.mxu0 0.0
    %1603 = vmatpush.msra.mxu0 0.0
    %1604 = vmatpush.msra.mxu0 %v1584
    %1605 = vmatmul.f32.gmra.mxu0 %v1587
    %v1606 = vpop.f32.mrf.mxu0
    %v1607 = vadd.f32 0.0, %v1606
    %1608 = vdwg.mxu0
    %v1610 = vrot.slane %v1564, 6
    %1612 = vmatpush.msra.mxu0 %v1582
    %1613 = vmatpush.msra.mxu0 %v1581
    %1614 = vmatpush.msra.mxu0 %v1580
    %1615 = vmatpush.msra.mxu0 %v1579
    %1616 = vmatpush.msra.mxu0 %v1578
    %1617 = vmatpush.msra.mxu0 %v1577
    %1618 = vmatpush.msra.mxu0 %v1576
    %1619 = vmatpush.msra.mxu0 %v1575
    %1620 = vmatpush.msra.mxu0 %v1574
    %1621 = vmatpush.msra.mxu0 %v1573
    %1622 = vmatpush.msra.mxu0 %v1572
    %1623 = vmatpush.msra.mxu0 %v1571
    %1624 = vmatpush.msra.mxu0 %v1570
    %1625 = vmatpush.msra.mxu0 %v1569
    %1626 = vmatpush.msra.mxu0 %v1568
    %1627 = vmatpush.msra.mxu0 %v1567
    %1628 = vmatmul.f32.gmra.mxu0 %v1610
    %v1629 = vpop.f32.mrf.mxu0
    %v1630 = vadd.f32 %v1607, %v1629
    %1631 = vdwg.mxu0
    %v1632 = vld [vmem:[%s7] sm:$0x1]
    %v1634 = vperm.slane %v1632, 0
    %v1636 = vadd.f32 %v1630, %v1634
    %v1637 = vmax.f32 %v1636, 0.0
    %v1638 = vld [vmem:[%s8] sm:$0xff]
    %v1639 = vld [vmem:[%s8 + $0x8] sm:$0xff]
    %v1640 = vld [vmem:[%s8 + $0x10] sm:$0xff]
    %v1641 = vld [vmem:[%s8 + $0x18] sm:$0xff]
    %v1642 = vld [vmem:[%s8 + $0x20] sm:$0xff]
    %v1643 = vld [vmem:[%s8 + $0x28] sm:$0xff]
    %v1644 = vld [vmem:[%s8 + $0x30] sm:$0xff]
    %v1645 = vld [vmem:[%s8 + $0x38] sm:$0xff]
    %v1646 = vld [vmem:[#allocation3] sm:$0x1]
    %v1648 = vperm.slane %v1646, 0
    %vm1650 = vcmask 523264
    %v1652 = vsel %vm1650, %v1637, 0
    %1654 = vmatpush.msra.mxu0 0.0
    %1655 = vmatpush.msra.mxu0 0.0
    %1656 = vmatpush.msra.mxu0 0.0
    %1657 = vmatpush.msra.mxu0 0.0
    %1658 = vmatpush.msra.mxu0 0.0
    %1659 = vmatpush.msra.mxu0 0.0
    %1660 = vmatpush.msra.mxu0 0.0
    %1661 = vmatpush.msra.mxu0 0.0
    %1662 = vmatpush.msra.mxu0 %v1645
    %1663 = vmatpush.msra.mxu0 %v1644
    %1664 = vmatpush.msra.mxu0 %v1643
    %1665 = vmatpush.msra.mxu0 %v1642
    %1666 = vmatpush.msra.mxu0 %v1641
    %1667 = vmatpush.msra.mxu0 %v1640
    %1668 = vmatpush.msra.mxu0 %v1639
    %1669 = vmatpush.msra.mxu0 %v1638
    %1670 = vmatmul.f32.gmra.mxu0 %v1652
    %v1671 = vpop.f32.mrf.mxu0
    %v1672 = vadd.f32 %v1648, %v1671
    %1673 = vdwg.mxu0
    %vm1674 = vcmask 1024
    %1675 = vst.msk [vmem:[%s10] sm:$0x3] %vm1674, %v1672
    // Predicated region
    $region46: #{critic_forward.1} parent=1 // pred_check
      _
    $region47: #{critic_forward.1} parent=1 // pred_check_branch
      %1677 = sbr.rel (0) target = $region49
    $region48: #{critic_forward.1} parent=1 // pred_region
      _
    $region49: #{critic_forward.1} parent=1 // pred_fallthru
      _
    // Predicated region
    $region50: #{critic_forward.1} parent=1 // pred_check
      _
    $region51: #{critic_forward.1} parent=1 // pred_check_branch
      %1679 = sbr.rel (0) target = $region53
    $region52: #{critic_forward.1} parent=1 // pred_region
      %1681 = vsyncadd [#allocation6], 0
      %s1683 = sshll.u32 [#allocation7], 4
      %s1684 = int_to_ptr.vmem [resolvable:$true] %s1683
      %s1685 = sshll.u32 %s11, 4
      %s1686 = int_to_ptr.hbm [resolvable:$true] %s1685
      %1688 = dma.vmem_to_hbm [thread:$0]  %s1684, 32, %s1686, [#allocation6]
    $region53: #{critic_forward.1} parent=1 // pred_fallthru
      _
    // Predicated region
    $region54: #{critic_forward.1} parent=1 // pred_check
      _
    $region55: #{critic_forward.1} parent=1 // pred_check_branch
      %1690 = sbr.rel (0) target = $region57
    $region56: #{critic_forward.1} parent=1 // pred_region
      %1692 = vsyncadd [#allocation9], 0
      %s1694 = sshll.u32 [#allocation8], 4
      %s1695 = int_to_ptr.vmem [resolvable:$true] %s1694
      %s1696 = sshll.u32 %s12, 4
      %s1697 = int_to_ptr.hbm [resolvable:$true] %s1696
      %1699 = dma.vmem_to_hbm [thread:$0]  %s1695, 32, %s1697, [#allocation9]
    $region57: #{critic_forward.1} parent=1 // pred_fallthru
      _
    // Predicated region
    $region58: #{critic_forward.1} parent=1 // pred_check
      _
    $region59: #{critic_forward.1} parent=1 // pred_check_branch
      %1701 = sbr.rel (0) target = $region61
    $region60: #{critic_forward.1} parent=1 // pred_region
      _
    $region61: #{critic_forward.1} parent=1 // pred_fallthru
      _
    // Predicated region
    $region62: #{critic_forward.1} parent=1 // pred_check
      _
    $region63: #{critic_forward.1} parent=1 // pred_check_branch
      %1703 = sbr.rel (0) target = $region65
    $region64: #{critic_forward.1} parent=1 // pred_region
      %1705 = dma.done [#allocation6], 32
    $region65: #{critic_forward.1} parent=1 // pred_fallthru
      _
    // Predicated region
    $region66: #{critic_forward.1} parent=1 // pred_check
      _
    $region67: #{critic_forward.1} parent=1 // pred_check_branch
      %1707 = sbr.rel (0) target = $region69
    $region68: #{critic_forward.1} parent=1 // pred_region
      %1709 = dma.done [#allocation9], 32
    $region69: #{critic_forward.1} parent=1 // pred_fallthru
      _
    %1710 = vsyncpa [#allocation5], 1
    %1711 = vsyncpa [#allocation6], 1
    %1712 = vsyncpa [#allocation9], 1

</llo_original>
